<compile_context>
chip_gen: v7x
topology: tpu7x:2x2x1
jax: 0.10.0
libtpu: 0.0.40
codegen_flags: <defaults>
</compile_context>

<pallas_src>
import jax
import jax.numpy as jnp
import numpy as np
from jax.experimental import pallas as pl
from jax.experimental.pallas import tpu as pltpu  # noqa: F401  (kept for production-size variants)

# ---------------- configuration (small synthetic shapes) ----------------
B = 2            # batch
C = 3            # image channels per data-channel
H = W = 16       # spatial
LAT = 8          # lat_dim
N_CHANNELS = 2   # number of data channels ('fundus', 'cmr')
D_IN = C * H * W
D_OUT = C * H * W
NB = N_CHANNELS * B              # stacked decode LHS rows
DEC_N = N_CHANNELS * D_OUT       # concatenated decoder output width (lane-dense, 1536)
DROPOUT_THRESHOLD = 0.2
NOISE_INIT_LOGVAR = 3.0


# ---------------- fused Pallas kernel (single grid step) ----------------
def fused_vae_kernel(x_ref, enc_w_ref, enc_b_ref, la_ref, ehla_ref, keep_ref,
                     dec_w_ref, dec_b_ref, lat_ref, loc_ref):
    """Whole eval-mode forward in one step.

    encode (per channel i, unrolled):  mu_i = x_i @ W_mu[i] + b[i]
    logvar = log_alpha + 2*log(|mu| + 1e-8)
    scale  = (|mu| + 1e-8) * exp(0.5*log_alpha)   (== exp(0.5*logvar))
    eval sample: z = mu
    variational dropout: z *= keep  (keep precomputed on host)
    decode: loc = z_stacked @ [W_out_0 | W_out_1] + [b_out_0 | b_out_1]
    """
    la = la_ref[...]        # (1, LAT)  log_alpha
    ehla = ehla_ref[...]    # (1, LAT)  exp(0.5*log_alpha)  (hoisted)
    keep = keep_ref[...]    # (1, LAT)  dropout keep mask   (hoisted)

    # ---- encode: one small matmul per channel, statically unrolled ----
    mus = [
        jnp.dot(x_ref[i], enc_w_ref[i], preferred_element_type=jnp.float32)
        + enc_b_ref[i]
        for i in range(N_CHANNELS)
    ]
    mu = jnp.concatenate(mus, axis=0)          # (N*B, LAT)

    abs_mu = jnp.abs(mu) + 1e-8
    logvar = la + 2.0 * jnp.log(abs_mu)
    scale = abs_mu * ehla

    # direct slice stores (no lane concat / relayout)
    lat_ref[0] = mu
    lat_ref[1] = logvar
    lat_ref[2] = scale

    # ---- decode: one matmul produces loc for every (source, target) pair ----
    z = mu * keep
    loc_ref[...] = (jnp.dot(z, dec_w_ref[...], preferred_element_type=jnp.float32)
                    + dec_b_ref[...])


@jax.jit
def _fused_forward(x_stacked, enc_w, enc_b, log_alpha, exp_half_la, keep, dec_w, dec_b):
    return pl.pallas_call(
        fused_vae_kernel,
        out_shape=(
            jax.ShapeDtypeStruct((3, NB, LAT), jnp.float32),       # [mu, logvar, scale]
            jax.ShapeDtypeStruct((NB, DEC_N), jnp.float32),        # decode locs
        ),
        in_specs=[
            pl.BlockSpec((N_CHANNELS, B, D_IN), lambda: (0, 0, 0)),     # x
            pl.BlockSpec((N_CHANNELS, D_IN, LAT), lambda: (0, 0, 0)),   # enc W (un-padded)
            pl.BlockSpec((N_CHANNELS, 1, LAT), lambda: (0, 0, 0)),      # enc b
            pl.BlockSpec((1, LAT), lambda: (0, 0)),                     # log_alpha
            pl.BlockSpec((1, LAT), lambda: (0, 0)),                     # exp(0.5*log_alpha)
            pl.BlockSpec((1, LAT), lambda: (0, 0)),                     # keep mask
            pl.BlockSpec((LAT, DEC_N), lambda: (0, 0)),                 # dec W cat (un-padded)
            pl.BlockSpec((1, DEC_N), lambda: (0, 0)),                   # dec b cat
        ],
        out_specs=(
            pl.BlockSpec((3, NB, LAT), lambda: (0, 0, 0)),
            pl.BlockSpec((NB, DEC_N), lambda: (0, 0)),
        ),
    )(x_stacked, enc_w, enc_b, log_alpha, exp_half_la, keep, dec_w, dec_b)


# ---------------- parameters ----------------
def pack_params(params):
    """Stack per-channel params into the fused-kernel layout; hoist log_alpha math."""
    enc_w = jnp.stack(params["enc_w"], axis=0)            # (N, D_IN, LAT)
    enc_b = jnp.stack(params["enc_b"], axis=0)            # (N, 1, LAT)
    log_alpha = params["log_alpha"]                        # (1, LAT)
    dec_w = jnp.concatenate(params["dec_w"], axis=1)       # (LAT, N*D_OUT)
    dec_b = jnp.concatenate(params["dec_b"], axis=1)       # (1, N*D_OUT)
    alpha = jnp.exp(log_alpha)
    keep = ((alpha / (alpha + 1.0)) < DROPOUT_THRESHOLD).astype(jnp.float32)
    exp_half_la = jnp.exp(0.5 * log_alpha)
    return {"enc_w": enc_w, "enc_b": enc_b, "log_alpha": log_alpha,
            "exp_half_la": exp_half_la, "keep": keep,
            "dec_w": dec_w, "dec_b": dec_b}


def init_params(key):
    keys = jax.random.split(key, 3 * N_CHANNELS + 1)
    params = {"enc_w": [], "enc_b": [], "dec_w": [], "dec_b": [], "out_logvar": []}
    k = 0
    for _ in range(N_CHANNELS):
        params["enc_w"].append(0.02 * jax.random.normal(keys[k], (D_IN, LAT), jnp.float32)); k += 1
        params["enc_b"].append(jnp.zeros((1, LAT), jnp.float32))
        params["dec_w"].append(0.02 * jax.random.normal(keys[k], (LAT, D_OUT), jnp.float32)); k += 1
        params["dec_b"].append(0.01 * jax.random.normal(keys[k], (1, D_OUT), jnp.float32)); k += 1
        # W_out_logvar: (C, H, W) filled with noise_init_logvar
        params["out_logvar"].append(jnp.full((C, H, W), NOISE_INIT_LOGVAR, jnp.float32))
    # log_alpha: (1, lat_dim). Module init is N(0, 0.01); shift half the components
    # so the variational-dropout mask keeps some latents and drops others.
    la = 0.01 * jax.random.normal(keys[-1], (1, LAT), jnp.float32)
    la = la + jnp.where(jnp.arange(LAT) % 2 == 0, -3.0, 0.0)[None, :]
    params["log_alpha"] = la
    params["fused"] = pack_params(params)
    return params


# ---------------- model (eval-mode forward) ----------------
def forward(params, x_list):
    """Eval-mode forward of MultiChannelSparseVAE."""
    f = params["fused"]
    x_stacked = jnp.stack([xi.reshape(B, D_IN) for xi in x_list], axis=0)  # (N, B, D_IN)

    lat, loc = _fused_forward(x_stacked, f["enc_w"], f["enc_b"], f["log_alpha"],
                              f["exp_half_la"], f["keep"], f["dec_w"], f["dec_b"])

    mask = f["keep"]  # dropout keep mask (1, LAT)

    # q(z|x_i) = Normal(mu_i, scale_i); eval sample_from: zx_i = loc
    qzx, zx = [], []
    for i in range(N_CHANNELS):
        mu = lat[0, i * B:(i + 1) * B]
        logvar = lat[1, i * B:(i + 1) * B]
        scale = lat[2, i * B:(i + 1) * B]
        qzx.append({"loc": mu, "scale": scale, "logvar": logvar})
        zx.append(mu)

    # p(x_j | z_i) = Normal(W_out[j](z_i * mask), exp(W_out_logvar[j])^0.5)
    pxz = []
    for i in range(N_CHANNELS):
        row = []
        for j in range(N_CHANNELS):
            loc_ij = loc[i * B:(i + 1) * B, j * D_OUT:(j + 1) * D_OUT].reshape(B, C, H, W)
            scale_out = jnp.broadcast_to(
                jnp.exp(0.5 * params["out_logvar"][j])[None], (B, C, H, W))
            row.append({"loc": loc_ij, "scale": scale_out})
        pxz.append(row)

    return {"x": x_list, "qzx": qzx, "zx": zx, "pxz": pxz, "dropout_mask": mask}


# ---------------- pure-JAX reference for sanity check ----------------
def forward_ref(params, x_list):
    log_alpha = params["log_alpha"]
    mus, logvars, scales = [], [], []
    for i, xi in enumerate(x_list):
        mu = xi.reshape(B, D_IN) @ params["enc_w"][i] + params["enc_b"][i]
        lv = log_alpha + 2.0 * jnp.log(jnp.abs(mu) + 1e-8)
        mus.append(mu); logvars.append(lv); scales.append(jnp.exp(0.5 * lv))
    alpha = jnp.exp(log_alpha)
    mask = ((alpha / (alpha + 1.0)) < DROPOUT_THRESHOLD).astype(jnp.float32)
    locs = []
    for i in range(N_CHANNELS):
        for j in range(N_CHANNELS):
            loc = (mus[i] * mask) @ params["dec_w"][j] + params["dec_b"][j]
            locs.append(loc.reshape(B, C, H, W))
    return mus, logvars, scales, locs


if __name__ == "__main__":
    key = jax.random.PRNGKey(0)
    kx, kp = jax.random.split(key)
    x_list = [
        jax.random.normal(jax.random.fold_in(kx, ch), (B, C, H, W), jnp.float32)
        for ch in range(N_CHANNELS)
    ]
    params = init_params(kp)

    out = forward(params, x_list)
    jax.block_until_ready(out["pxz"][0][0]["loc"])

    # sanity check against pure-JAX reference
    mus_ref, logvars_ref, scales_ref, locs_ref = forward_ref(params, x_list)
    for i in range(N_CHANNELS):
        np.testing.assert_allclose(np.asarray(out["qzx"][i]["loc"]),
                                   np.asarray(mus_ref[i]), rtol=1e-5, atol=1e-5)
        np.testing.assert_allclose(np.asarray(out["qzx"][i]["logvar"]),
                                   np.asarray(logvars_ref[i]), rtol=1e-5, atol=1e-5)
        np.testing.assert_allclose(np.asarray(out["qzx"][i]["scale"]),
                                   np.asarray(scales_ref[i]), rtol=1e-5, atol=1e-5)
    idx = 0
    for i in range(N_CHANNELS):
        for j in range(N_CHANNELS):
            np.testing.assert_allclose(np.asarray(out["pxz"][i][j]["loc"]),
                                       np.asarray(locs_ref[idx]), rtol=1e-5, atol=1e-5)
            idx += 1

    print("KERNEL_OK")
</pallas_src>

<mosaic_0001>
module attributes {stable_mosaic.version = 11 : i64} {
  func.func @fused_vae_kernel(%arg0: memref<2x2x768xf32, #tpu.memory_space<vmem>>, %arg1: memref<2x768x8xf32, #tpu.memory_space<vmem>>, %arg2: memref<2x1x8xf32, #tpu.memory_space<vmem>>, %arg3: memref<1x8xf32, #tpu.memory_space<vmem>>, %arg4: memref<1x8xf32, #tpu.memory_space<vmem>>, %arg5: memref<1x8xf32, #tpu.memory_space<vmem>>, %arg6: memref<8x1536xf32, #tpu.memory_space<vmem>>, %arg7: memref<1x1536xf32, #tpu.memory_space<vmem>>, %arg8: memref<3x4x8xf32, #tpu.memory_space<vmem>>, %arg9: memref<4x1536xf32, #tpu.memory_space<vmem>>) attributes {dimension_semantics = [], scalar_prefetch = 0 : i64, scratch_operands = 0 : i64, tpu.core_type = #tpu.core_type<tc>} {
    %c0 = arith.constant 0 : index
    %c0_0 = arith.constant 0 : index
    %0 = vector.load %arg3[%c0, %c0_0] : memref<1x8xf32, #tpu.memory_space<vmem>>, vector<1x8xf32>
    %c0_1 = arith.constant 0 : index
    %c0_2 = arith.constant 0 : index
    %1 = vector.load %arg4[%c0_1, %c0_2] : memref<1x8xf32, #tpu.memory_space<vmem>>, vector<1x8xf32>
    %c0_3 = arith.constant 0 : index
    %c0_4 = arith.constant 0 : index
    %2 = vector.load %arg5[%c0_3, %c0_4] : memref<1x8xf32, #tpu.memory_space<vmem>>, vector<1x8xf32>
    %c0_5 = arith.constant 0 : index
    %c0_6 = arith.constant 0 : index
    %c0_7 = arith.constant 0 : index
    %3 = vector.load %arg0[%c0_5, %c0_6, %c0_7] : memref<2x2x768xf32, #tpu.memory_space<vmem>>, vector<1x2x768xf32>
    %4 = vector.shape_cast %3 : vector<1x2x768xf32> to vector<2x768xf32>
    %c0_8 = arith.constant 0 : index
    %c0_9 = arith.constant 0 : index
    %c0_10 = arith.constant 0 : index
    %5 = vector.load %arg1[%c0_8, %c0_9, %c0_10] : memref<2x768x8xf32, #tpu.memory_space<vmem>>, vector<1x768x8xf32>
    %6 = vector.shape_cast %5 : vector<1x768x8xf32> to vector<768x8xf32>
    %cst = arith.constant dense<0.000000e+00> : vector<2x8xf32>
    %7 = tpu.matmul %4, %6, %cst {dimension_numbers = #tpu.dot_dimension_numbers<[1], [0], [0], [1], [0, 0, 1, 1], [], []>} : vector<2x768xf32>, vector<768x8xf32>, vector<2x8xf32> -> vector<2x8xf32>
    %c0_11 = arith.constant 0 : index
    %c0_12 = arith.constant 0 : index
    %c0_13 = arith.constant 0 : index
    %8 = vector.load %arg2[%c0_11, %c0_12, %c0_13] : memref<2x1x8xf32, #tpu.memory_space<vmem>>, vector<1x1x8xf32>
    %9 = vector.shape_cast %8 : vector<1x1x8xf32> to vector<1x8xf32>
    %10 = vector.broadcast %9 : vector<1x8xf32> to vector<2x8xf32>
    %11 = arith.addf %7, %10 : vector<2x8xf32>
    %c1 = arith.constant 1 : index
    %c0_14 = arith.constant 0 : index
    %c0_15 = arith.constant 0 : index
    %12 = vector.load %arg0[%c1, %c0_14, %c0_15] : memref<2x2x768xf32, #tpu.memory_space<vmem>>, vector<1x2x768xf32>
    %13 = vector.shape_cast %12 : vector<1x2x768xf32> to vector<2x768xf32>
    %c1_16 = arith.constant 1 : index
    %c0_17 = arith.constant 0 : index
    %c0_18 = arith.constant 0 : index
    %14 = vector.load %arg1[%c1_16, %c0_17, %c0_18] : memref<2x768x8xf32, #tpu.memory_space<vmem>>, vector<1x768x8xf32>
    %15 = vector.shape_cast %14 : vector<1x768x8xf32> to vector<768x8xf32>
    %cst_19 = arith.constant dense<0.000000e+00> : vector<2x8xf32>
    %16 = tpu.matmul %13, %15, %cst_19 {dimension_numbers = #tpu.dot_dimension_numbers<[1], [0], [0], [1], [0, 0, 1, 1], [], []>} : vector<2x768xf32>, vector<768x8xf32>, vector<2x8xf32> -> vector<2x8xf32>
    %c1_20 = arith.constant 1 : index
    %c0_21 = arith.constant 0 : index
    %c0_22 = arith.constant 0 : index
    %17 = vector.load %arg2[%c1_20, %c0_21, %c0_22] : memref<2x1x8xf32, #tpu.memory_space<vmem>>, vector<1x1x8xf32>
    %18 = vector.shape_cast %17 : vector<1x1x8xf32> to vector<1x8xf32>
    %19 = vector.broadcast %18 : vector<1x8xf32> to vector<2x8xf32>
    %20 = arith.addf %16, %19 : vector<2x8xf32>
    %21 = tpu.concatenate %11, %20 in 0 : vector<2x8xf32>, vector<2x8xf32> -> vector<4x8xf32>
    %22 = math.absf %21 : vector<4x8xf32>
    %cst_23 = arith.constant 9.99999993E-9 : f32
    %23 = vector.broadcast %cst_23 : f32 to vector<4x8xf32>
    %24 = arith.addf %22, %23 : vector<4x8xf32>
    %25 = math.log %24 : vector<4x8xf32>
    %cst_24 = arith.constant 2.000000e+00 : f32
    %26 = vector.broadcast %cst_24 : f32 to vector<4x8xf32>
    %27 = arith.mulf %26, %25 : vector<4x8xf32>
    %28 = vector.broadcast %0 : vector<1x8xf32> to vector<4x8xf32>
    %29 = arith.addf %28, %27 : vector<4x8xf32>
    %30 = vector.broadcast %1 : vector<1x8xf32> to vector<4x8xf32>
    %31 = arith.mulf %24, %30 : vector<4x8xf32>
    %c0_25 = arith.constant 0 : index
    %c0_26 = arith.constant 0 : index
    %c0_27 = arith.constant 0 : index
    %32 = vector.load %arg8[%c0_25, %c0_26, %c0_27] : memref<3x4x8xf32, #tpu.memory_space<vmem>>, vector<1x4x8xf32>
    %33 = vector.shape_cast %32 : vector<1x4x8xf32> to vector<4x8xf32>
    %34 = vector.shape_cast %21 : vector<4x8xf32> to vector<1x4x8xf32>
    tpu.vector_store %arg8[%c0_25, %c0_26, %c0_27], %34 {strides = array<i32>} : memref<3x4x8xf32, #tpu.memory_space<vmem>>, vector<1x4x8xf32>,
    %c1_28 = arith.constant 1 : index
    %c0_29 = arith.constant 0 : index
    %c0_30 = arith.constant 0 : index
    %35 = vector.load %arg8[%c1_28, %c0_29, %c0_30] : memref<3x4x8xf32, #tpu.memory_space<vmem>>, vector<1x4x8xf32>
    %36 = vector.shape_cast %35 : vector<1x4x8xf32> to vector<4x8xf32>
    %37 = vector.shape_cast %29 : vector<4x8xf32> to vector<1x4x8xf32>
    tpu.vector_store %arg8[%c1_28, %c0_29, %c0_30], %37 {strides = array<i32>} : memref<3x4x8xf32, #tpu.memory_space<vmem>>, vector<1x4x8xf32>,
    %c2 = arith.constant 2 : index
    %c0_31 = arith.constant 0 : index
    %c0_32 = arith.constant 0 : index
    %38 = vector.load %arg8[%c2, %c0_31, %c0_32] : memref<3x4x8xf32, #tpu.memory_space<vmem>>, vector<1x4x8xf32>
    %39 = vector.shape_cast %38 : vector<1x4x8xf32> to vector<4x8xf32>
    %40 = vector.shape_cast %31 : vector<4x8xf32> to vector<1x4x8xf32>
    tpu.vector_store %arg8[%c2, %c0_31, %c0_32], %40 {strides = array<i32>} : memref<3x4x8xf32, #tpu.memory_space<vmem>>, vector<1x4x8xf32>,
    %41 = vector.broadcast %2 : vector<1x8xf32> to vector<4x8xf32>
    %42 = arith.mulf %21, %41 : vector<4x8xf32>
    %c0_33 = arith.constant 0 : index
    %c0_34 = arith.constant 0 : index
    %43 = vector.load %arg6[%c0_33, %c0_34] : memref<8x1536xf32, #tpu.memory_space<vmem>>, vector<8x1536xf32>
    %cst_35 = arith.constant dense<0.000000e+00> : vector<4x1536xf32>
    %44 = tpu.matmul %42, %43, %cst_35 {dimension_numbers = #tpu.dot_dimension_numbers<[1], [0], [0], [1], [0, 0, 1, 1], [], []>} : vector<4x8xf32>, vector<8x1536xf32>, vector<4x1536xf32> -> vector<4x1536xf32>
    %c0_36 = arith.constant 0 : index
    %c0_37 = arith.constant 0 : index
    %45 = vector.load %arg7[%c0_36, %c0_37] : memref<1x1536xf32, #tpu.memory_space<vmem>>, vector<1x1536xf32>
    %46 = vector.broadcast %45 : vector<1x1536xf32> to vector<4x1536xf32>
    %47 = arith.addf %44, %46 : vector<4x1536xf32>
    %c0_38 = arith.constant 0 : index
    %c0_39 = arith.constant 0 : index
    %48 = vector.load %arg9[%c0_38, %c0_39] : memref<4x1536xf32, #tpu.memory_space<vmem>>, vector<4x1536xf32>
    tpu.vector_store %arg9[%c0_38, %c0_39], %47 {strides = array<i32>} : memref<4x1536xf32, #tpu.memory_space<vmem>>, vector<4x1536xf32>,
    return
  }
}

</mosaic_0001>

<llo_original>
// kernel: _fused_forward.1
$region0: #{_fused_forward.1}
  #allocation0 [shape = 'u32[]', space=smem, size = 0x4, offset = 0x4, fixed_abs, tag = 'smem constant byte address 0x4 - core index']
  #allocation1 [shape = 'u32[144,128]{1,0:T(1,128)}', space=vmem, size = 0x12000, scoped, tag = 'internal scratch']
  %s0 = inlined_call_operand.vmem [shape: f32[2,2,768], index: 0, kind: input, shape index: {}]
  %s1 = inlined_call_operand.vmem [shape: f32[2,768,8], index: 1, kind: input, shape index: {}]
  %s2 = inlined_call_operand.vmem [shape: f32[2,1,8], index: 2, kind: input, shape index: {}]
  %s3 = inlined_call_operand.vmem [shape: f32[1,8], index: 3, kind: input, shape index: {}]
  %s4 = inlined_call_operand.vmem [shape: f32[1,8], index: 4, kind: input, shape index: {}]
  %s5 = inlined_call_operand.vmem [shape: f32[1,8], index: 5, kind: input, shape index: {}]
  %s6 = inlined_call_operand.vmem [shape: f32[8,1536], index: 6, kind: input, shape index: {}]
  %s7 = inlined_call_operand.vmem [shape: f32[1,1536], index: 7, kind: input, shape index: {}]
  %s8 = inlined_call_operand.hbm [shape: f32[3,4,8], index: 8, kind: output, shape index: {0}]
  %s9 = inlined_call_operand.hbm [shape: f32[4,1536], index: 9, kind: output, shape index: {1}]
  %10 = xla_tuple %s8, %s9
  %s11 = sld [smem:[#allocation0]]
  $region50: #{_fused_forward.1} parent=0
    _
  %s13 = ssub.s32 1, %s11
  %s14 = scalar_select 0, %s13, %s11
  $region1: #{_fused_forward.1} parent=0
    #allocation2 [shape = 'u8[6144]{0}', space=vmem, size = 0x1800, scoped, tag = 'output window, operand 0, single buffered']
    #allocation3 [shape = 's32[1]{0}', space=sflag, size = 0x4, scoped, tag = 'scoped memory for _fused_forward.1']
    #allocation4 [shape = 'u8[24576]{0}', space=vmem, size = 0x6000, scoped, tag = 'output window, operand 1, single buffered']
    #allocation5 [shape = 's32[1]{0}', space=sflag, size = 0x4, scoped, tag = 'scoped memory for _fused_forward.1']
    %15 = vsyncpa [#allocation3], 0
    %16 = vsyncpa [#allocation5], 0
    // Predicated region
    $region2: #{_fused_forward.1} parent=1 // pred_check
      _
    $region3: #{_fused_forward.1} parent=1 // pred_check_branch
      %18 = sbr.rel (0) target = $region5
    $region4: #{_fused_forward.1} parent=1 // pred_region
      _
    $region5: #{_fused_forward.1} parent=1 // pred_fallthru
      _
    // Predicated region
    $region6: #{_fused_forward.1} parent=1 // pred_check
      _
    $region7: #{_fused_forward.1} parent=1 // pred_check_branch
      %20 = sbr.rel (0) target = $region9
    $region8: #{_fused_forward.1} parent=1 // pred_region
      _
    $region9: #{_fused_forward.1} parent=1 // pred_fallthru
      _
    // Predicated region
    $region10: #{_fused_forward.1} parent=1 // pred_check
      _
    $region11: #{_fused_forward.1} parent=1 // pred_check_branch
      %22 = sbr.rel (0) target = $region13
    $region12: #{_fused_forward.1} parent=1 // pred_region
      _
    $region13: #{_fused_forward.1} parent=1 // pred_fallthru
      _
    // Predicated region
    $region14: #{_fused_forward.1} parent=1 // pred_check
      _
    $region15: #{_fused_forward.1} parent=1 // pred_check_branch
      %24 = sbr.rel (0) target = $region17
    $region16: #{_fused_forward.1} parent=1 // pred_region
      _
    $region17: #{_fused_forward.1} parent=1 // pred_fallthru
      _
    // Predicated region
    $region18: #{_fused_forward.1} parent=1 // pred_check
      _
    $region19: #{_fused_forward.1} parent=1 // pred_check_branch
      %26 = sbr.rel (0) target = $region21
    $region20: #{_fused_forward.1} parent=1 // pred_region
      _
    $region21: #{_fused_forward.1} parent=1 // pred_fallthru
      _
    // Predicated region
    $region22: #{_fused_forward.1} parent=1 // pred_check
      _
    $region23: #{_fused_forward.1} parent=1 // pred_check_branch
      %28 = sbr.rel (0) target = $region25
    $region24: #{_fused_forward.1} parent=1 // pred_region
      _
    $region25: #{_fused_forward.1} parent=1 // pred_fallthru
      _
    // Predicated region
    $region26: #{_fused_forward.1} parent=1 // pred_check
      _
    $region27: #{_fused_forward.1} parent=1 // pred_check_branch
      %30 = sbr.rel (0) target = $region29
    $region28: #{_fused_forward.1} parent=1 // pred_region
      _
    $region29: #{_fused_forward.1} parent=1 // pred_fallthru
      _
    // Predicated region
    $region30: #{_fused_forward.1} parent=1 // pred_check
      _
    $region31: #{_fused_forward.1} parent=1 // pred_check_branch
      %32 = sbr.rel (0) target = $region33
    $region32: #{_fused_forward.1} parent=1 // pred_region
      _
    $region33: #{_fused_forward.1} parent=1 // pred_fallthru
      _
    %v33 = vld [vmem:[%s3] sm:$0x1]
    %v34 = vld [vmem:[%s4] sm:$0x1]
    %v35 = vld [vmem:[%s5] sm:$0x1]
    %v36 = vld [vmem:[%s0] sm:$0xff]
    %v37 = vld [vmem:[%s0 + $0x8] sm:$0xf]
    %v38 = vld [vmem:[%s1] sm:$0xff]
    %v39 = vld [vmem:[%s1 + $0x8] sm:$0xff]
    %v40 = vld [vmem:[%s1 + $0x10] sm:$0xff]
    %v41 = vld [vmem:[%s1 + $0x18] sm:$0xff]
    %v42 = vld [vmem:[%s1 + $0x20] sm:$0xff]
    %v43 = vld [vmem:[%s1 + $0x28] sm:$0xff]
    %v44 = vld [vmem:[%s1 + $0x30] sm:$0xff]
    %v45 = vld [vmem:[%s1 + $0x38] sm:$0xff]
    %v46 = vld [vmem:[%s1 + $0x40] sm:$0xff]
    %v47 = vld [vmem:[%s1 + $0x48] sm:$0xff]
    %v48 = vld [vmem:[%s1 + $0x50] sm:$0xff]
    %v49 = vld [vmem:[%s1 + $0x58] sm:$0xff]
    %v50 = vld [vmem:[%s1 + $0x60] sm:$0xff]
    %v51 = vld [vmem:[%s1 + $0x68] sm:$0xff]
    %v52 = vld [vmem:[%s1 + $0x70] sm:$0xff]
    %v53 = vld [vmem:[%s1 + $0x78] sm:$0xff]
    %v54 = vld [vmem:[%s1 + $0x80] sm:$0xff]
    %v55 = vld [vmem:[%s1 + $0x88] sm:$0xff]
    %v56 = vld [vmem:[%s1 + $0x90] sm:$0xff]
    %v57 = vld [vmem:[%s1 + $0x98] sm:$0xff]
    %v58 = vld [vmem:[%s1 + $0xa0] sm:$0xff]
    %v59 = vld [vmem:[%s1 + $0xa8] sm:$0xff]
    %v60 = vld [vmem:[%s1 + $0xb0] sm:$0xff]
    %v61 = vld [vmem:[%s1 + $0xb8] sm:$0xff]
    %v62 = vld [vmem:[%s1 + $0xc0] sm:$0xff]
    %v63 = vld [vmem:[%s1 + $0xc8] sm:$0xff]
    %v64 = vld [vmem:[%s1 + $0xd0] sm:$0xff]
    %v65 = vld [vmem:[%s1 + $0xd8] sm:$0xff]
    %v66 = vld [vmem:[%s1 + $0xe0] sm:$0xff]
    %v67 = vld [vmem:[%s1 + $0xe8] sm:$0xff]
    %v68 = vld [vmem:[%s1 + $0xf0] sm:$0xff]
    %v69 = vld [vmem:[%s1 + $0xf8] sm:$0xff]
    %v70 = vld [vmem:[%s1 + $0x100] sm:$0xff]
    %v71 = vld [vmem:[%s1 + $0x108] sm:$0xff]
    %v72 = vld [vmem:[%s1 + $0x110] sm:$0xff]
    %v73 = vld [vmem:[%s1 + $0x118] sm:$0xff]
    %v74 = vld [vmem:[%s1 + $0x120] sm:$0xff]
    %v75 = vld [vmem:[%s1 + $0x128] sm:$0xff]
    %v76 = vld [vmem:[%s1 + $0x130] sm:$0xff]
    %v77 = vld [vmem:[%s1 + $0x138] sm:$0xff]
    %v78 = vld [vmem:[%s1 + $0x140] sm:$0xff]
    %v79 = vld [vmem:[%s1 + $0x148] sm:$0xff]
    %v80 = vld [vmem:[%s1 + $0x150] sm:$0xff]
    %v81 = vld [vmem:[%s1 + $0x158] sm:$0xff]
    %v82 = vld [vmem:[%s1 + $0x160] sm:$0xff]
    %v83 = vld [vmem:[%s1 + $0x168] sm:$0xff]
    %v84 = vld [vmem:[%s1 + $0x170] sm:$0xff]
    %v85 = vld [vmem:[%s1 + $0x178] sm:$0xff]
    %v86 = vld [vmem:[%s1 + $0x180] sm:$0xff]
    %v87 = vld [vmem:[%s1 + $0x188] sm:$0xff]
    %v88 = vld [vmem:[%s1 + $0x190] sm:$0xff]
    %v89 = vld [vmem:[%s1 + $0x198] sm:$0xff]
    %v90 = vld [vmem:[%s1 + $0x1a0] sm:$0xff]
    %v91 = vld [vmem:[%s1 + $0x1a8] sm:$0xff]
    %v92 = vld [vmem:[%s1 + $0x1b0] sm:$0xff]
    %v93 = vld [vmem:[%s1 + $0x1b8] sm:$0xff]
    %v94 = vld [vmem:[%s1 + $0x1c0] sm:$0xff]
    %v95 = vld [vmem:[%s1 + $0x1c8] sm:$0xff]
    %v96 = vld [vmem:[%s1 + $0x1d0] sm:$0xff]
    %v97 = vld [vmem:[%s1 + $0x1d8] sm:$0xff]
    %v98 = vld [vmem:[%s1 + $0x1e0] sm:$0xff]
    %v99 = vld [vmem:[%s1 + $0x1e8] sm:$0xff]
    %v100 = vld [vmem:[%s1 + $0x1f0] sm:$0xff]
    %v101 = vld [vmem:[%s1 + $0x1f8] sm:$0xff]
    %v102 = vld [vmem:[%s1 + $0x200] sm:$0xff]
    %v103 = vld [vmem:[%s1 + $0x208] sm:$0xff]
    %v104 = vld [vmem:[%s1 + $0x210] sm:$0xff]
    %v105 = vld [vmem:[%s1 + $0x218] sm:$0xff]
    %v106 = vld [vmem:[%s1 + $0x220] sm:$0xff]
    %v107 = vld [vmem:[%s1 + $0x228] sm:$0xff]
    %v108 = vld [vmem:[%s1 + $0x230] sm:$0xff]
    %v109 = vld [vmem:[%s1 + $0x238] sm:$0xff]
    %v110 = vld [vmem:[%s1 + $0x240] sm:$0xff]
    %v111 = vld [vmem:[%s1 + $0x248] sm:$0xff]
    %v112 = vld [vmem:[%s1 + $0x250] sm:$0xff]
    %v113 = vld [vmem:[%s1 + $0x258] sm:$0xff]
    %v114 = vld [vmem:[%s1 + $0x260] sm:$0xff]
    %v115 = vld [vmem:[%s1 + $0x268] sm:$0xff]
    %v116 = vld [vmem:[%s1 + $0x270] sm:$0xff]
    %v117 = vld [vmem:[%s1 + $0x278] sm:$0xff]
    %v118 = vld [vmem:[%s1 + $0x280] sm:$0xff]
    %v119 = vld [vmem:[%s1 + $0x288] sm:$0xff]
    %v120 = vld [vmem:[%s1 + $0x290] sm:$0xff]
    %v121 = vld [vmem:[%s1 + $0x298] sm:$0xff]
    %v122 = vld [vmem:[%s1 + $0x2a0] sm:$0xff]
    %v123 = vld [vmem:[%s1 + $0x2a8] sm:$0xff]
    %v124 = vld [vmem:[%s1 + $0x2b0] sm:$0xff]
    %v125 = vld [vmem:[%s1 + $0x2b8] sm:$0xff]
    %v126 = vld [vmem:[%s1 + $0x2c0] sm:$0xff]
    %v127 = vld [vmem:[%s1 + $0x2c8] sm:$0xff]
    %v128 = vld [vmem:[%s1 + $0x2d0] sm:$0xff]
    %v129 = vld [vmem:[%s1 + $0x2d8] sm:$0xff]
    %v130 = vld [vmem:[%s1 + $0x2e0] sm:$0xff]
    %v131 = vld [vmem:[%s1 + $0x2e8] sm:$0xff]
    %v132 = vld [vmem:[%s1 + $0x2f0] sm:$0xff]
    %v133 = vld [vmem:[%s1 + $0x2f8] sm:$0xff]
    %v134 = vld [vmem:[%s2] sm:$0x1]
    %v136 = vlaneseq
    %v137 = vshrl.u32 %v136, 7
    %v138 = vsub.s32 0, %v137
    %v139 = vrot.slane %v134, %v138
    %v143 = vcombine.high %v36, %v36
    %v145 = vunpack.c.l.s4 1983009808
    %v146 = vunpack.c.0.s8 %v145
    %v147 = vlaneseq
    %v148 = vshrl.u32 %v147, 7
    %v149 = vsub.s32 %v146, %v148
    %v150 = vrot.slane %v36, %v149
    %v152 = vunpack.c.l.s4 1983009808
    %v153 = vunpack.c.0.s8 %v152
    %v154 = vlaneseq
    %v155 = vshrl.u32 %v154, 7
    %v156 = vsub.s32 %v153, %v155
    %v157 = vrot.slane %v143, %v156
    %v158 = vcombine.high %v150, %v150
    %v159 = vcombine.high %v157, %v157
    %v161 = vunpack.c.l.s4 1983009808
    %v162 = vunpack.c.0.s8 %v161
    %v163 = vlaneseq
    %v164 = vshrl.u32 %v163, 7
    %v165 = vsub.s32 %v162, %v164
    %v166 = vrot.slane %v37, %v165
    %v167 = vcombine.high %v166, %v166
    %174 = vmatprep.subr.mxu0 0.0
    %175 = vmatpush1.msra.mxu0 %v38
    %176 = vmatprep.subr.mxu0 0.0
    %177 = vmatpush1.msra.mxu0 %v39
    %178 = vmatprep.subr.mxu0 0.0
    %179 = vmatpush1.msra.mxu0 %v40
    %180 = vmatprep.subr.mxu0 0.0
    %181 = vmatpush1.msra.mxu0 %v41
    %182 = vmatprep.subr.mxu0 0.0
    %183 = vmatpush1.msra.mxu0 %v42
    %184 = vmatprep.subr.mxu0 0.0
    %185 = vmatpush1.msra.mxu0 %v43
    %186 = vmatprep.subr.mxu0 0.0
    %187 = vmatpush1.msra.mxu0 %v44
    %188 = vmatprep.subr.mxu0 0.0
    %189 = vmatpush1.msra.mxu0 %v45
    %190 = vmatprep.subr.mxu0 0.0
    %191 = vmatpush1.msra.mxu0 %v46
    %192 = vmatprep.subr.mxu0 0.0
    %193 = vmatpush1.msra.mxu0 %v47
    %194 = vmatprep.subr.mxu0 0.0
    %195 = vmatpush1.msra.mxu0 %v48
    %196 = vmatprep.subr.mxu0 0.0
    %197 = vmatpush1.msra.mxu0 %v49
    %198 = vmatprep.subr.mxu0 0.0
    %199 = vmatpush1.msra.mxu0 %v50
    %200 = vmatprep.subr.mxu0 0.0
    %201 = vmatpush1.msra.mxu0 %v51
    %202 = vmatprep.subr.mxu0 0.0
    %203 = vmatpush1.msra.mxu0 %v52
    %204 = vmatprep.subr.mxu0 0.0
    %205 = vmatpush1.msra.mxu0 %v53
    %206 = vmatprep.subr.mxu0 0.0
    %207 = vmatpush1.msra.mxu0 %v54
    %208 = vmatprep.subr.mxu0 0.0
    %209 = vmatpush1.msra.mxu0 %v55
    %210 = vmatprep.subr.mxu0 0.0
    %211 = vmatpush1.msra.mxu0 %v56
    %212 = vmatprep.subr.mxu0 0.0
    %213 = vmatpush1.msra.mxu0 %v57
    %214 = vmatprep.subr.mxu0 0.0
    %215 = vmatpush1.msra.mxu0 %v58
    %216 = vmatprep.subr.mxu0 0.0
    %217 = vmatpush1.msra.mxu0 %v59
    %218 = vmatprep.subr.mxu0 0.0
    %219 = vmatpush1.msra.mxu0 %v60
    %220 = vmatprep.subr.mxu0 0.0
    %221 = vmatpush1.msra.mxu0 %v61
    %222 = vmatprep.subr.mxu0 0.0
    %223 = vmatpush1.msra.mxu0 %v62
    %224 = vmatprep.subr.mxu0 0.0
    %225 = vmatpush1.msra.mxu0 %v63
    %226 = vmatprep.subr.mxu0 0.0
    %227 = vmatpush1.msra.mxu0 %v64
    %228 = vmatprep.subr.mxu0 0.0
    %229 = vmatpush1.msra.mxu0 %v65
    %230 = vmatprep.subr.mxu0 0.0
    %231 = vmatpush1.msra.mxu0 %v66
    %232 = vmatprep.subr.mxu0 0.0
    %233 = vmatpush1.msra.mxu0 %v67
    %234 = vmatprep.subr.mxu0 0.0
    %235 = vmatpush1.msra.mxu0 %v68
    %236 = vmatprep.subr.mxu0 0.0
    %237 = vmatpush1.msra.mxu0 %v69
    %238 = vmatprep.mubr.f32.mxu0 %v158
    %239 = vmatmul.mubr.f32.gmra.mrb[0].mxu0 %v150
    %v240 = vpop.f32.mrb[0].mxu0
    %v241 = vadd.f32 %v139, %v240
    %v242 = vpop.f32.mrb[0].mxu0
    %243 = vdwg.mxu0
    %244 = vmatprep.subr.mxu0 0.0
    %245 = vmatpush1.msra.mxu0 %v70
    %246 = vmatprep.subr.mxu0 0.0
    %247 = vmatpush1.msra.mxu0 %v71
    %248 = vmatprep.subr.mxu0 0.0
    %249 = vmatpush1.msra.mxu0 %v72
    %250 = vmatprep.subr.mxu0 0.0
    %251 = vmatpush1.msra.mxu0 %v73
    %252 = vmatprep.subr.mxu0 0.0
    %253 = vmatpush1.msra.mxu0 %v74
    %254 = vmatprep.subr.mxu0 0.0
    %255 = vmatpush1.msra.mxu0 %v75
    %256 = vmatprep.subr.mxu0 0.0
    %257 = vmatpush1.msra.mxu0 %v76
    %258 = vmatprep.subr.mxu0 0.0
    %259 = vmatpush1.msra.mxu0 %v77
    %260 = vmatprep.subr.mxu0 0.0
    %261 = vmatpush1.msra.mxu0 %v78
    %262 = vmatprep.subr.mxu0 0.0
    %263 = vmatpush1.msra.mxu0 %v79
    %264 = vmatprep.subr.mxu0 0.0
    %265 = vmatpush1.msra.mxu0 %v80
    %266 = vmatprep.subr.mxu0 0.0
    %267 = vmatpush1.msra.mxu0 %v81
    %268 = vmatprep.subr.mxu0 0.0
    %269 = vmatpush1.msra.mxu0 %v82
    %270 = vmatprep.subr.mxu0 0.0
    %271 = vmatpush1.msra.mxu0 %v83
    %272 = vmatprep.subr.mxu0 0.0
    %273 = vmatpush1.msra.mxu0 %v84
    %274 = vmatprep.subr.mxu0 0.0
    %275 = vmatpush1.msra.mxu0 %v85
    %276 = vmatprep.subr.mxu0 0.0
    %277 = vmatpush1.msra.mxu0 %v86
    %278 = vmatprep.subr.mxu0 0.0
    %279 = vmatpush1.msra.mxu0 %v87
    %280 = vmatprep.subr.mxu0 0.0
    %281 = vmatpush1.msra.mxu0 %v88
    %282 = vmatprep.subr.mxu0 0.0
    %283 = vmatpush1.msra.mxu0 %v89
    %284 = vmatprep.subr.mxu0 0.0
    %285 = vmatpush1.msra.mxu0 %v90
    %286 = vmatprep.subr.mxu0 0.0
    %287 = vmatpush1.msra.mxu0 %v91
    %288 = vmatprep.subr.mxu0 0.0
    %289 = vmatpush1.msra.mxu0 %v92
    %290 = vmatprep.subr.mxu0 0.0
    %291 = vmatpush1.msra.mxu0 %v93
    %292 = vmatprep.subr.mxu0 0.0
    %293 = vmatpush1.msra.mxu0 %v94
    %294 = vmatprep.subr.mxu0 0.0
    %295 = vmatpush1.msra.mxu0 %v95
    %296 = vmatprep.subr.mxu0 0.0
    %297 = vmatpush1.msra.mxu0 %v96
    %298 = vmatprep.subr.mxu0 0.0
    %299 = vmatpush1.msra.mxu0 %v97
    %300 = vmatprep.subr.mxu0 0.0
    %301 = vmatpush1.msra.mxu0 %v98
    %302 = vmatprep.subr.mxu0 0.0
    %303 = vmatpush1.msra.mxu0 %v99
    %304 = vmatprep.subr.mxu0 0.0
    %305 = vmatpush1.msra.mxu0 %v100
    %306 = vmatprep.subr.mxu0 0.0
    %307 = vmatpush1.msra.mxu0 %v101
    %308 = vmatprep.mubr.f32.mxu0 %v159
    %309 = vmatmul.mubr.f32.gmra.mrb[0].mxu0 %v157
    %v310 = vpop.f32.mrb[0].mxu0
    %v311 = vadd.f32 %v241, %v310
    %v312 = vpop.f32.mrb[0].mxu0
    %313 = vdwg.mxu0
    %314 = vmatprep.subr.mxu0 0.0
    %315 = vmatpush1.msra.mxu0 %v102
    %316 = vmatprep.subr.mxu0 0.0
    %317 = vmatpush1.msra.mxu0 %v103
    %318 = vmatprep.subr.mxu0 0.0
    %319 = vmatpush1.msra.mxu0 %v104
    %320 = vmatprep.subr.mxu0 0.0
    %321 = vmatpush1.msra.mxu0 %v105
    %322 = vmatprep.subr.mxu0 0.0
    %323 = vmatpush1.msra.mxu0 %v106
    %324 = vmatprep.subr.mxu0 0.0
    %325 = vmatpush1.msra.mxu0 %v107
    %326 = vmatprep.subr.mxu0 0.0
    %327 = vmatpush1.msra.mxu0 %v108
    %328 = vmatprep.subr.mxu0 0.0
    %329 = vmatpush1.msra.mxu0 %v109
    %330 = vmatprep.subr.mxu0 0.0
    %331 = vmatpush1.msra.mxu0 %v110
    %332 = vmatprep.subr.mxu0 0.0
    %333 = vmatpush1.msra.mxu0 %v111
    %334 = vmatprep.subr.mxu0 0.0
    %335 = vmatpush1.msra.mxu0 %v112
    %336 = vmatprep.subr.mxu0 0.0
    %337 = vmatpush1.msra.mxu0 %v113
    %338 = vmatprep.subr.mxu0 0.0
    %339 = vmatpush1.msra.mxu0 %v114
    %340 = vmatprep.subr.mxu0 0.0
    %341 = vmatpush1.msra.mxu0 %v115
    %342 = vmatprep.subr.mxu0 0.0
    %343 = vmatpush1.msra.mxu0 %v116
    %344 = vmatprep.subr.mxu0 0.0
    %345 = vmatpush1.msra.mxu0 %v117
    %346 = vmatprep.subr.mxu0 0.0
    %347 = vmatpush1.msra.mxu0 %v118
    %348 = vmatprep.subr.mxu0 0.0
    %349 = vmatpush1.msra.mxu0 %v119
    %350 = vmatprep.subr.mxu0 0.0
    %351 = vmatpush1.msra.mxu0 %v120
    %352 = vmatprep.subr.mxu0 0.0
    %353 = vmatpush1.msra.mxu0 %v121
    %354 = vmatprep.subr.mxu0 0.0
    %355 = vmatpush1.msra.mxu0 %v122
    %356 = vmatprep.subr.mxu0 0.0
    %357 = vmatpush1.msra.mxu0 %v123
    %358 = vmatprep.subr.mxu0 0.0
    %359 = vmatpush1.msra.mxu0 %v124
    %360 = vmatprep.subr.mxu0 0.0
    %361 = vmatpush1.msra.mxu0 %v125
    %362 = vmatprep.subr.mxu0 0.0
    %363 = vmatpush1.msra.mxu0 %v126
    %364 = vmatprep.subr.mxu0 0.0
    %365 = vmatpush1.msra.mxu0 %v127
    %366 = vmatprep.subr.mxu0 0.0
    %367 = vmatpush1.msra.mxu0 %v128
    %368 = vmatprep.subr.mxu0 0.0
    %369 = vmatpush1.msra.mxu0 %v129
    %370 = vmatprep.subr.mxu0 0.0
    %371 = vmatpush1.msra.mxu0 %v130
    %372 = vmatprep.subr.mxu0 0.0
    %373 = vmatpush1.msra.mxu0 %v131
    %374 = vmatprep.subr.mxu0 0.0
    %375 = vmatpush1.msra.mxu0 %v132
    %376 = vmatprep.subr.mxu0 0.0
    %377 = vmatpush1.msra.mxu0 %v133
    %378 = vmatprep.mubr.f32.mxu0 %v167
    %379 = vmatmul.mubr.f32.gmra.mrb[0].mxu0 %v166
    %v380 = vpop.f32.mrb[0].mxu0
    %v381 = vadd.f32 %v311, %v380
    %v382 = vpop.f32.mrb[0].mxu0
    %383 = vdwg.mxu0
    %s384 = scalar_lea.vmem %s0, 12
    %v385 = vld [vmem:[%s384] sm:$0xff]
    %v386 = vld [vmem:[%s384 + $0x8] sm:$0xf]
    %s387 = scalar_lea.vmem %s1, 768
    %v388 = vld [vmem:[%s387] sm:$0xff]
    %v389 = vld [vmem:[%s387 + $0x8] sm:$0xff]
    %v390 = vld [vmem:[%s387 + $0x10] sm:$0xff]
    %v391 = vld [vmem:[%s387 + $0x18] sm:$0xff]
    %v392 = vld [vmem:[%s387 + $0x20] sm:$0xff]
    %v393 = vld [vmem:[%s387 + $0x28] sm:$0xff]
    %v394 = vld [vmem:[%s387 + $0x30] sm:$0xff]
    %v395 = vld [vmem:[%s387 + $0x38] sm:$0xff]
    %v396 = vld [vmem:[%s387 + $0x40] sm:$0xff]
    %v397 = vld [vmem:[%s387 + $0x48] sm:$0xff]
    %v398 = vld [vmem:[%s387 + $0x50] sm:$0xff]
    %v399 = vld [vmem:[%s387 + $0x58] sm:$0xff]
    %v400 = vld [vmem:[%s387 + $0x60] sm:$0xff]
    %v401 = vld [vmem:[%s387 + $0x68] sm:$0xff]
    %v402 = vld [vmem:[%s387 + $0x70] sm:$0xff]
    %v403 = vld [vmem:[%s387 + $0x78] sm:$0xff]
    %v404 = vld [vmem:[%s387 + $0x80] sm:$0xff]
    %v405 = vld [vmem:[%s387 + $0x88] sm:$0xff]
    %v406 = vld [vmem:[%s387 + $0x90] sm:$0xff]
    %v407 = vld [vmem:[%s387 + $0x98] sm:$0xff]
    %v408 = vld [vmem:[%s387 + $0xa0] sm:$0xff]
    %v409 = vld [vmem:[%s387 + $0xa8] sm:$0xff]
    %v410 = vld [vmem:[%s387 + $0xb0] sm:$0xff]
    %v411 = vld [vmem:[%s387 + $0xb8] sm:$0xff]
    %v412 = vld [vmem:[%s387 + $0xc0] sm:$0xff]
    %v413 = vld [vmem:[%s387 + $0xc8] sm:$0xff]
    %v414 = vld [vmem:[%s387 + $0xd0] sm:$0xff]
    %v415 = vld [vmem:[%s387 + $0xd8] sm:$0xff]
    %v416 = vld [vmem:[%s387 + $0xe0] sm:$0xff]
    %v417 = vld [vmem:[%s387 + $0xe8] sm:$0xff]
    %v418 = vld [vmem:[%s387 + $0xf0] sm:$0xff]
    %v419 = vld [vmem:[%s387 + $0xf8] sm:$0xff]
    %v420 = vld [vmem:[%s387 + $0x100] sm:$0xff]
    %v421 = vld [vmem:[%s387 + $0x108] sm:$0xff]
    %v422 = vld [vmem:[%s387 + $0x110] sm:$0xff]
    %v423 = vld [vmem:[%s387 + $0x118] sm:$0xff]
    %v424 = vld [vmem:[%s387 + $0x120] sm:$0xff]
    %v425 = vld [vmem:[%s387 + $0x128] sm:$0xff]
    %v426 = vld [vmem:[%s387 + $0x130] sm:$0xff]
    %v427 = vld [vmem:[%s387 + $0x138] sm:$0xff]
    %v428 = vld [vmem:[%s387 + $0x140] sm:$0xff]
    %v429 = vld [vmem:[%s387 + $0x148] sm:$0xff]
    %v430 = vld [vmem:[%s387 + $0x150] sm:$0xff]
    %v431 = vld [vmem:[%s387 + $0x158] sm:$0xff]
    %v432 = vld [vmem:[%s387 + $0x160] sm:$0xff]
    %v433 = vld [vmem:[%s387 + $0x168] sm:$0xff]
    %v434 = vld [vmem:[%s387 + $0x170] sm:$0xff]
    %v435 = vld [vmem:[%s387 + $0x178] sm:$0xff]
    %v436 = vld [vmem:[%s387 + $0x180] sm:$0xff]
    %v437 = vld [vmem:[%s387 + $0x188] sm:$0xff]
    %v438 = vld [vmem:[%s387 + $0x190] sm:$0xff]
    %v439 = vld [vmem:[%s387 + $0x198] sm:$0xff]
    %v440 = vld [vmem:[%s387 + $0x1a0] sm:$0xff]
    %v441 = vld [vmem:[%s387 + $0x1a8] sm:$0xff]
    %v442 = vld [vmem:[%s387 + $0x1b0] sm:$0xff]
    %v443 = vld [vmem:[%s387 + $0x1b8] sm:$0xff]
    %v444 = vld [vmem:[%s387 + $0x1c0] sm:$0xff]
    %v445 = vld [vmem:[%s387 + $0x1c8] sm:$0xff]
    %v446 = vld [vmem:[%s387 + $0x1d0] sm:$0xff]
    %v447 = vld [vmem:[%s387 + $0x1d8] sm:$0xff]
    %v448 = vld [vmem:[%s387 + $0x1e0] sm:$0xff]
    %v449 = vld [vmem:[%s387 + $0x1e8] sm:$0xff]
    %v450 = vld [vmem:[%s387 + $0x1f0] sm:$0xff]
    %v451 = vld [vmem:[%s387 + $0x1f8] sm:$0xff]
    %v452 = vld [vmem:[%s387 + $0x200] sm:$0xff]
    %v453 = vld [vmem:[%s387 + $0x208] sm:$0xff]
    %v454 = vld [vmem:[%s387 + $0x210] sm:$0xff]
    %v455 = vld [vmem:[%s387 + $0x218] sm:$0xff]
    %v456 = vld [vmem:[%s387 + $0x220] sm:$0xff]
    %v457 = vld [vmem:[%s387 + $0x228] sm:$0xff]
    %v458 = vld [vmem:[%s387 + $0x230] sm:$0xff]
    %v459 = vld [vmem:[%s387 + $0x238] sm:$0xff]
    %v460 = vld [vmem:[%s387 + $0x240] sm:$0xff]
    %v461 = vld [vmem:[%s387 + $0x248] sm:$0xff]
    %v462 = vld [vmem:[%s387 + $0x250] sm:$0xff]
    %v463 = vld [vmem:[%s387 + $0x258] sm:$0xff]
    %v464 = vld [vmem:[%s387 + $0x260] sm:$0xff]
    %v465 = vld [vmem:[%s387 + $0x268] sm:$0xff]
    %v466 = vld [vmem:[%s387 + $0x270] sm:$0xff]
    %v467 = vld [vmem:[%s387 + $0x278] sm:$0xff]
    %v468 = vld [vmem:[%s387 + $0x280] sm:$0xff]
    %v469 = vld [vmem:[%s387 + $0x288] sm:$0xff]
    %v470 = vld [vmem:[%s387 + $0x290] sm:$0xff]
    %v471 = vld [vmem:[%s387 + $0x298] sm:$0xff]
    %v472 = vld [vmem:[%s387 + $0x2a0] sm:$0xff]
    %v473 = vld [vmem:[%s387 + $0x2a8] sm:$0xff]
    %v474 = vld [vmem:[%s387 + $0x2b0] sm:$0xff]
    %v475 = vld [vmem:[%s387 + $0x2b8] sm:$0xff]
    %v476 = vld [vmem:[%s387 + $0x2c0] sm:$0xff]
    %v477 = vld [vmem:[%s387 + $0x2c8] sm:$0xff]
    %v478 = vld [vmem:[%s387 + $0x2d0] sm:$0xff]
    %v479 = vld [vmem:[%s387 + $0x2d8] sm:$0xff]
    %v480 = vld [vmem:[%s387 + $0x2e0] sm:$0xff]
    %v481 = vld [vmem:[%s387 + $0x2e8] sm:$0xff]
    %v482 = vld [vmem:[%s387 + $0x2f0] sm:$0xff]
    %v483 = vld [vmem:[%s387 + $0x2f8] sm:$0xff]
    %s484 = scalar_lea.vmem %s2, 1
    %v485 = vld [vmem:[%s484] sm:$0x1]
    %v487 = vlaneseq
    %v488 = vshrl.u32 %v487, 7
    %v489 = vsub.s32 0, %v488
    %v490 = vrot.slane %v485, %v489
    %v494 = vcombine.high %v385, %v385
    %v496 = vunpack.c.l.s4 1983009808
    %v497 = vunpack.c.0.s8 %v496
    %v498 = vlaneseq
    %v499 = vshrl.u32 %v498, 7
    %v500 = vsub.s32 %v497, %v499
    %v501 = vrot.slane %v385, %v500
    %v503 = vunpack.c.l.s4 1983009808
    %v504 = vunpack.c.0.s8 %v503
    %v505 = vlaneseq
    %v506 = vshrl.u32 %v505, 7
    %v507 = vsub.s32 %v504, %v506
    %v508 = vrot.slane %v494, %v507
    %v509 = vcombine.high %v501, %v501
    %v510 = vcombine.high %v508, %v508
    %v512 = vunpack.c.l.s4 1983009808
    %v513 = vunpack.c.0.s8 %v512
    %v514 = vlaneseq
    %v515 = vshrl.u32 %v514, 7
    %v516 = vsub.s32 %v513, %v515
    %v517 = vrot.slane %v386, %v516
    %v518 = vcombine.high %v517, %v517
    %525 = vmatprep.subr.mxu0 0.0
    %526 = vmatpush1.msra.mxu0 %v388
    %527 = vmatprep.subr.mxu0 0.0
    %528 = vmatpush1.msra.mxu0 %v389
    %529 = vmatprep.subr.mxu0 0.0
    %530 = vmatpush1.msra.mxu0 %v390
    %531 = vmatprep.subr.mxu0 0.0
    %532 = vmatpush1.msra.mxu0 %v391
    %533 = vmatprep.subr.mxu0 0.0
    %534 = vmatpush1.msra.mxu0 %v392
    %535 = vmatprep.subr.mxu0 0.0
    %536 = vmatpush1.msra.mxu0 %v393
    %537 = vmatprep.subr.mxu0 0.0
    %538 = vmatpush1.msra.mxu0 %v394
    %539 = vmatprep.subr.mxu0 0.0
    %540 = vmatpush1.msra.mxu0 %v395
    %541 = vmatprep.subr.mxu0 0.0
    %542 = vmatpush1.msra.mxu0 %v396
    %543 = vmatprep.subr.mxu0 0.0
    %544 = vmatpush1.msra.mxu0 %v397
    %545 = vmatprep.subr.mxu0 0.0
    %546 = vmatpush1.msra.mxu0 %v398
    %547 = vmatprep.subr.mxu0 0.0
    %548 = vmatpush1.msra.mxu0 %v399
    %549 = vmatprep.subr.mxu0 0.0
    %550 = vmatpush1.msra.mxu0 %v400
    %551 = vmatprep.subr.mxu0 0.0
    %552 = vmatpush1.msra.mxu0 %v401
    %553 = vmatprep.subr.mxu0 0.0
    %554 = vmatpush1.msra.mxu0 %v402
    %555 = vmatprep.subr.mxu0 0.0
    %556 = vmatpush1.msra.mxu0 %v403
    %557 = vmatprep.subr.mxu0 0.0
    %558 = vmatpush1.msra.mxu0 %v404
    %559 = vmatprep.subr.mxu0 0.0
    %560 = vmatpush1.msra.mxu0 %v405
    %561 = vmatprep.subr.mxu0 0.0
    %562 = vmatpush1.msra.mxu0 %v406
    %563 = vmatprep.subr.mxu0 0.0
    %564 = vmatpush1.msra.mxu0 %v407
    %565 = vmatprep.subr.mxu0 0.0
    %566 = vmatpush1.msra.mxu0 %v408
    %567 = vmatprep.subr.mxu0 0.0
    %568 = vmatpush1.msra.mxu0 %v409
    %569 = vmatprep.subr.mxu0 0.0
    %570 = vmatpush1.msra.mxu0 %v410
    %571 = vmatprep.subr.mxu0 0.0
    %572 = vmatpush1.msra.mxu0 %v411
    %573 = vmatprep.subr.mxu0 0.0
    %574 = vmatpush1.msra.mxu0 %v412
    %575 = vmatprep.subr.mxu0 0.0
    %576 = vmatpush1.msra.mxu0 %v413
    %577 = vmatprep.subr.mxu0 0.0
    %578 = vmatpush1.msra.mxu0 %v414
    %579 = vmatprep.subr.mxu0 0.0
    %580 = vmatpush1.msra.mxu0 %v415
    %581 = vmatprep.subr.mxu0 0.0
    %582 = vmatpush1.msra.mxu0 %v416
    %583 = vmatprep.subr.mxu0 0.0
    %584 = vmatpush1.msra.mxu0 %v417
    %585 = vmatprep.subr.mxu0 0.0
    %586 = vmatpush1.msra.mxu0 %v418
    %587 = vmatprep.subr.mxu0 0.0
    %588 = vmatpush1.msra.mxu0 %v419
    %589 = vmatprep.mubr.f32.mxu0 %v509
    %590 = vmatmul.mubr.f32.gmra.mrb[0].mxu0 %v501
    %v591 = vpop.f32.mrb[0].mxu0
    %v592 = vadd.f32 %v490, %v591
    %v593 = vpop.f32.mrb[0].mxu0
    %594 = vdwg.mxu0
    %595 = vmatprep.subr.mxu0 0.0
    %596 = vmatpush1.msra.mxu0 %v420
    %597 = vmatprep.subr.mxu0 0.0
    %598 = vmatpush1.msra.mxu0 %v421
    %599 = vmatprep.subr.mxu0 0.0
    %600 = vmatpush1.msra.mxu0 %v422
    %601 = vmatprep.subr.mxu0 0.0
    %602 = vmatpush1.msra.mxu0 %v423
    %603 = vmatprep.subr.mxu0 0.0
    %604 = vmatpush1.msra.mxu0 %v424
    %605 = vmatprep.subr.mxu0 0.0
    %606 = vmatpush1.msra.mxu0 %v425
    %607 = vmatprep.subr.mxu0 0.0
    %608 = vmatpush1.msra.mxu0 %v426
    %609 = vmatprep.subr.mxu0 0.0
    %610 = vmatpush1.msra.mxu0 %v427
    %611 = vmatprep.subr.mxu0 0.0
    %612 = vmatpush1.msra.mxu0 %v428
    %613 = vmatprep.subr.mxu0 0.0
    %614 = vmatpush1.msra.mxu0 %v429
    %615 = vmatprep.subr.mxu0 0.0
    %616 = vmatpush1.msra.mxu0 %v430
    %617 = vmatprep.subr.mxu0 0.0
    %618 = vmatpush1.msra.mxu0 %v431
    %619 = vmatprep.subr.mxu0 0.0
    %620 = vmatpush1.msra.mxu0 %v432
    %621 = vmatprep.subr.mxu0 0.0
    %622 = vmatpush1.msra.mxu0 %v433
    %623 = vmatprep.subr.mxu0 0.0
    %624 = vmatpush1.msra.mxu0 %v434
    %625 = vmatprep.subr.mxu0 0.0
    %626 = vmatpush1.msra.mxu0 %v435
    %627 = vmatprep.subr.mxu0 0.0
    %628 = vmatpush1.msra.mxu0 %v436
    %629 = vmatprep.subr.mxu0 0.0
    %630 = vmatpush1.msra.mxu0 %v437
    %631 = vmatprep.subr.mxu0 0.0
    %632 = vmatpush1.msra.mxu0 %v438
    %633 = vmatprep.subr.mxu0 0.0
    %634 = vmatpush1.msra.mxu0 %v439
    %635 = vmatprep.subr.mxu0 0.0
    %636 = vmatpush1.msra.mxu0 %v440
    %637 = vmatprep.subr.mxu0 0.0
    %638 = vmatpush1.msra.mxu0 %v441
    %639 = vmatprep.subr.mxu0 0.0
    %640 = vmatpush1.msra.mxu0 %v442
    %641 = vmatprep.subr.mxu0 0.0
    %642 = vmatpush1.msra.mxu0 %v443
    %643 = vmatprep.subr.mxu0 0.0
    %644 = vmatpush1.msra.mxu0 %v444
    %645 = vmatprep.subr.mxu0 0.0
    %646 = vmatpush1.msra.mxu0 %v445
    %647 = vmatprep.subr.mxu0 0.0
    %648 = vmatpush1.msra.mxu0 %v446
    %649 = vmatprep.subr.mxu0 0.0
    %650 = vmatpush1.msra.mxu0 %v447
    %651 = vmatprep.subr.mxu0 0.0
    %652 = vmatpush1.msra.mxu0 %v448
    %653 = vmatprep.subr.mxu0 0.0
    %654 = vmatpush1.msra.mxu0 %v449
    %655 = vmatprep.subr.mxu0 0.0
    %656 = vmatpush1.msra.mxu0 %v450
    %657 = vmatprep.subr.mxu0 0.0
    %658 = vmatpush1.msra.mxu0 %v451
    %659 = vmatprep.mubr.f32.mxu0 %v510
    %660 = vmatmul.mubr.f32.gmra.mrb[0].mxu0 %v508
    %v661 = vpop.f32.mrb[0].mxu0
    %v662 = vadd.f32 %v592, %v661
    %v663 = vpop.f32.mrb[0].mxu0
    %664 = vdwg.mxu0
    %665 = vmatprep.subr.mxu0 0.0
    %666 = vmatpush1.msra.mxu0 %v452
    %667 = vmatprep.subr.mxu0 0.0
    %668 = vmatpush1.msra.mxu0 %v453
    %669 = vmatprep.subr.mxu0 0.0
    %670 = vmatpush1.msra.mxu0 %v454
    %671 = vmatprep.subr.mxu0 0.0
    %672 = vmatpush1.msra.mxu0 %v455
    %673 = vmatprep.subr.mxu0 0.0
    %674 = vmatpush1.msra.mxu0 %v456
    %675 = vmatprep.subr.mxu0 0.0
    %676 = vmatpush1.msra.mxu0 %v457
    %677 = vmatprep.subr.mxu0 0.0
    %678 = vmatpush1.msra.mxu0 %v458
    %679 = vmatprep.subr.mxu0 0.0
    %680 = vmatpush1.msra.mxu0 %v459
    %681 = vmatprep.subr.mxu0 0.0
    %682 = vmatpush1.msra.mxu0 %v460
    %683 = vmatprep.subr.mxu0 0.0
    %684 = vmatpush1.msra.mxu0 %v461
    %685 = vmatprep.subr.mxu0 0.0
    %686 = vmatpush1.msra.mxu0 %v462
    %687 = vmatprep.subr.mxu0 0.0
    %688 = vmatpush1.msra.mxu0 %v463
    %689 = vmatprep.subr.mxu0 0.0
    %690 = vmatpush1.msra.mxu0 %v464
    %691 = vmatprep.subr.mxu0 0.0
    %692 = vmatpush1.msra.mxu0 %v465
    %693 = vmatprep.subr.mxu0 0.0
    %694 = vmatpush1.msra.mxu0 %v466
    %695 = vmatprep.subr.mxu0 0.0
    %696 = vmatpush1.msra.mxu0 %v467
    %697 = vmatprep.subr.mxu0 0.0
    %698 = vmatpush1.msra.mxu0 %v468
    %699 = vmatprep.subr.mxu0 0.0
    %700 = vmatpush1.msra.mxu0 %v469
    %701 = vmatprep.subr.mxu0 0.0
    %702 = vmatpush1.msra.mxu0 %v470
    %703 = vmatprep.subr.mxu0 0.0
    %704 = vmatpush1.msra.mxu0 %v471
    %705 = vmatprep.subr.mxu0 0.0
    %706 = vmatpush1.msra.mxu0 %v472
    %707 = vmatprep.subr.mxu0 0.0
    %708 = vmatpush1.msra.mxu0 %v473
    %709 = vmatprep.subr.mxu0 0.0
    %710 = vmatpush1.msra.mxu0 %v474
    %711 = vmatprep.subr.mxu0 0.0
    %712 = vmatpush1.msra.mxu0 %v475
    %713 = vmatprep.subr.mxu0 0.0
    %714 = vmatpush1.msra.mxu0 %v476
    %715 = vmatprep.subr.mxu0 0.0
    %716 = vmatpush1.msra.mxu0 %v477
    %717 = vmatprep.subr.mxu0 0.0
    %718 = vmatpush1.msra.mxu0 %v478
    %719 = vmatprep.subr.mxu0 0.0
    %720 = vmatpush1.msra.mxu0 %v479
    %721 = vmatprep.subr.mxu0 0.0
    %722 = vmatpush1.msra.mxu0 %v480
    %723 = vmatprep.subr.mxu0 0.0
    %724 = vmatpush1.msra.mxu0 %v481
    %725 = vmatprep.subr.mxu0 0.0
    %726 = vmatpush1.msra.mxu0 %v482
    %727 = vmatprep.subr.mxu0 0.0
    %728 = vmatpush1.msra.mxu0 %v483
    %729 = vmatprep.mubr.f32.mxu0 %v518
    %730 = vmatmul.mubr.f32.gmra.mrb[0].mxu0 %v517
    %v731 = vpop.f32.mrb[0].mxu0
    %v732 = vadd.f32 %v662, %v731
    %v733 = vpop.f32.mrb[0].mxu0
    %734 = vdwg.mxu0
    %v736 = vrot.slane %v732, 6
    %vm738 = vcmask 1041408
    %v739 = vsel %vm738, %v381, %v736
    %v740 = vand.u32 2147483647, %v739
    %v741 = vadd.f32 %v740, 1e-08
    %v742 = vlog2.pop %v741
    %v743 = vmul.f32 %v742, 0.6931472
    %v744 = vmul.f32 %v743, 2.0
    %v746 = vlaneseq
    %v747 = vshrl.u32 %v746, 7
    %v748 = vsub.s32 0, %v747
    %v749 = vrot.slane %v33, %v748
    %v751 = vadd.f32 %v749, %v744
    %v753 = vlaneseq
    %v754 = vshrl.u32 %v753, 7
    %v755 = vsub.s32 0, %v754
    %v756 = vrot.slane %v34, %v755
    %v758 = vmul.f32 %v741, %v756
    %vm759 = vcmask 60416
    %760 = vst.msk [vmem:[#allocation2] sm:$0xf] %vm759, %v739
    %s761 = scalar_lea.vmem [#allocation2], 4
    %762 = vst.msk [vmem:[%s761] sm:$0xf] %vm759, %v751
    %s763 = scalar_lea.vmem [#allocation2], 8
    %764 = vst.msk [vmem:[%s763] sm:$0xf] %vm759, %v758
    %v766 = vlaneseq
    %v767 = vshrl.u32 %v766, 7
    %v768 = vsub.s32 0, %v767
    %v769 = vrot.slane %v35, %v768
    %v771 = vmul.f32 %v739, %v769
    %v772 = vld [vmem:[%s6] sm:$0xff]
    %v773 = vld [vmem:[%s6 + $0x8] sm:$0xff]
    %v774 = vld [vmem:[%s6 + $0x10] sm:$0xff]
    %v775 = vld [vmem:[%s6 + $0x18] sm:$0xff]
    %v776 = vld [vmem:[%s6 + $0x20] sm:$0xff]
    %v777 = vld [vmem:[%s6 + $0x28] sm:$0xff]
    %v778 = vld [vmem:[%s6 + $0x30] sm:$0xff]
    %v779 = vld [vmem:[%s6 + $0x38] sm:$0xff]
    %v780 = vld [vmem:[%s6 + $0x40] sm:$0xff]
    %v781 = vld [vmem:[%s6 + $0x48] sm:$0xff]
    %v782 = vld [vmem:[%s6 + $0x50] sm:$0xff]
    %v783 = vld [vmem:[%s6 + $0x58] sm:$0xff]
    %v784 = vld [vmem:[%s7] sm:$0xff]
    %v785 = vld [vmem:[%s7 + $0x8] sm:$0xf]
    %v788 = vlaneseq
    %v789 = vshrl.u32 %v788, 7
    %v790 = vsub.s32 0, %v789
    %v791 = vrot.slane %v784, %v790
    %v792 = vlaneseq
    %v793 = vshrl.u32 %v792, 7
    %v794 = vsub.s32 1, %v793
    %v795 = vrot.slane %v784, %v794
    %v796 = vlaneseq
    %v797 = vshrl.u32 %v796, 7
    %v798 = vsub.s32 2, %v797
    %v799 = vrot.slane %v784, %v798
    %v800 = vlaneseq
    %v801 = vshrl.u32 %v800, 7
    %v802 = vsub.s32 3, %v801
    %v803 = vrot.slane %v784, %v802
    %v804 = vlaneseq
    %v805 = vshrl.u32 %v804, 7
    %v806 = vsub.s32 4, %v805
    %v807 = vrot.slane %v784, %v806
    %v808 = vlaneseq
    %v809 = vshrl.u32 %v808, 7
    %v810 = vsub.s32 5, %v809
    %v811 = vrot.slane %v784, %v810
    %v812 = vlaneseq
    %v813 = vshrl.u32 %v812, 7
    %v814 = vsub.s32 6, %v813
    %v815 = vrot.slane %v784, %v814
    %v816 = vlaneseq
    %v817 = vshrl.u32 %v816, 7
    %v818 = vsub.s32 7, %v817
    %v819 = vrot.slane %v784, %v818
    %v820 = vlaneseq
    %v821 = vshrl.u32 %v820, 7
    %v822 = vsub.s32 0, %v821
    %v823 = vrot.slane %v785, %v822
    %v824 = vlaneseq
    %v825 = vshrl.u32 %v824, 7
    %v826 = vsub.s32 1, %v825
    %v827 = vrot.slane %v785, %v826
    %v828 = vlaneseq
    %v829 = vshrl.u32 %v828, 7
    %v830 = vsub.s32 2, %v829
    %v831 = vrot.slane %v785, %v830
    %v832 = vlaneseq
    %v833 = vshrl.u32 %v832, 7
    %v834 = vsub.s32 3, %v833
    %v835 = vrot.slane %v785, %v834
    %vm848 = vcmask 64512
    %v850 = vsel %vm848, %v771, 0
    %852 = vmatprep.subr.mxu0 %v773
    %853 = vmatpush1.msra.mxu0 %v772
    %854 = vmatprep.subr.mxu0 0.0
    %855 = vmatpush1.msra.mxu0 0.0
    %856 = vmatprep.subr.mxu0 0.0
    %857 = vmatpush1.msra.mxu0 0.0
    %858 = vmatprep.subr.mxu0 0.0
    %859 = vmatpush1.msra.mxu0 0.0
    %860 = vmatprep.subr.mxu0 0.0
    %861 = vmatpush1.msra.mxu0 0.0
    %862 = vmatprep.subr.mxu0 0.0
    %863 = vmatpush1.msra.mxu0 0.0
    %864 = vmatprep.subr.mxu0 0.0
    %865 = vmatpush1.msra.mxu0 0.0
    %866 = vmatprep.subr.mxu0 0.0
    %867 = vmatpush1.msra.mxu0 0.0
    %868 = vmatprep.subr.mxu0 0.0
    %869 = vmatpush1.msra.mxu0 0.0
    %870 = vmatprep.subr.mxu0 0.0
    %871 = vmatpush1.msra.mxu0 0.0
    %872 = vmatprep.subr.mxu0 0.0
    %873 = vmatpush1.msra.mxu0 0.0
    %874 = vmatprep.subr.mxu0 0.0
    %875 = vmatpush1.msra.mxu0 0.0
    %876 = vmatprep.subr.mxu0 0.0
    %877 = vmatpush1.msra.mxu0 0.0
    %878 = vmatprep.subr.mxu0 0.0
    %879 = vmatpush1.msra.mxu0 0.0
    %880 = vmatprep.subr.mxu0 0.0
    %881 = vmatpush1.msra.mxu0 0.0
    %882 = vmatprep.subr.mxu0 0.0
    %883 = vmatpush1.msra.mxu0 0.0
    %884 = vmatprep.subr.mxu0 0.0
    %885 = vmatpush1.msra.mxu0 0.0
    %886 = vmatprep.subr.mxu0 0.0
    %887 = vmatpush1.msra.mxu0 0.0
    %888 = vmatprep.subr.mxu0 0.0
    %889 = vmatpush1.msra.mxu0 0.0
    %890 = vmatprep.subr.mxu0 0.0
    %891 = vmatpush1.msra.mxu0 0.0
    %892 = vmatprep.subr.mxu0 0.0
    %893 = vmatpush1.msra.mxu0 0.0
    %894 = vmatprep.subr.mxu0 0.0
    %895 = vmatpush1.msra.mxu0 0.0
    %896 = vmatprep.subr.mxu0 0.0
    %897 = vmatpush1.msra.mxu0 0.0
    %898 = vmatprep.subr.mxu0 0.0
    %899 = vmatpush1.msra.mxu0 0.0
    %900 = vmatprep.subr.mxu0 0.0
    %901 = vmatpush1.msra.mxu0 0.0
    %902 = vmatprep.subr.mxu0 0.0
    %903 = vmatpush1.msra.mxu0 0.0
    %904 = vmatprep.subr.mxu0 0.0
    %905 = vmatpush1.msra.mxu0 0.0
    %906 = vmatprep.subr.mxu0 0.0
    %907 = vmatpush1.msra.mxu0 0.0
    %908 = vmatprep.subr.mxu0 0.0
    %909 = vmatpush1.msra.mxu0 0.0
    %910 = vmatprep.subr.mxu0 0.0
    %911 = vmatpush1.msra.mxu0 0.0
    %912 = vmatprep.subr.mxu0 0.0
    %913 = vmatpush1.msra.mxu0 0.0
    %914 = vmatprep.subr.mxu0 0.0
    %915 = vmatpush1.msra.mxu0 0.0
    %916 = vmatprep.mubr.f32.mxu0 0.0
    %917 = vmatmul.mubr.f32.gmra.mrb[0].mxu0 %v850
    %v918 = vpop.f32.mrb[0].mxu0
    %v919 = vadd.f32 %v791, %v918
    %v920 = vpop.f32.mrb[0].mxu0
    %v921 = vadd.f32 %v795, %v920
    %922 = vdwg.mxu0
    %923 = vmatprep.subr.mxu0 %v775
    %924 = vmatpush1.msra.mxu0 %v774
    %925 = vmatprep.subr.mxu0 0.0
    %926 = vmatpush1.msra.mxu0 0.0
    %927 = vmatprep.subr.mxu0 0.0
    %928 = vmatpush1.msra.mxu0 0.0
    %929 = vmatprep.subr.mxu0 0.0
    %930 = vmatpush1.msra.mxu0 0.0
    %931 = vmatprep.subr.mxu0 0.0
    %932 = vmatpush1.msra.mxu0 0.0
    %933 = vmatprep.subr.mxu0 0.0
    %934 = vmatpush1.msra.mxu0 0.0
    %935 = vmatprep.subr.mxu0 0.0
    %936 = vmatpush1.msra.mxu0 0.0
    %937 = vmatprep.subr.mxu0 0.0
    %938 = vmatpush1.msra.mxu0 0.0
    %939 = vmatprep.subr.mxu0 0.0
    %940 = vmatpush1.msra.mxu0 0.0
    %941 = vmatprep.subr.mxu0 0.0
    %942 = vmatpush1.msra.mxu0 0.0
    %943 = vmatprep.subr.mxu0 0.0
    %944 = vmatpush1.msra.mxu0 0.0
    %945 = vmatprep.subr.mxu0 0.0
    %946 = vmatpush1.msra.mxu0 0.0
    %947 = vmatprep.subr.mxu0 0.0
    %948 = vmatpush1.msra.mxu0 0.0
    %949 = vmatprep.subr.mxu0 0.0
    %950 = vmatpush1.msra.mxu0 0.0
    %951 = vmatprep.subr.mxu0 0.0
    %952 = vmatpush1.msra.mxu0 0.0
    %953 = vmatprep.subr.mxu0 0.0
    %954 = vmatpush1.msra.mxu0 0.0
    %955 = vmatprep.subr.mxu0 0.0
    %956 = vmatpush1.msra.mxu0 0.0
    %957 = vmatprep.subr.mxu0 0.0
    %958 = vmatpush1.msra.mxu0 0.0
    %959 = vmatprep.subr.mxu0 0.0
    %960 = vmatpush1.msra.mxu0 0.0
    %961 = vmatprep.subr.mxu0 0.0
    %962 = vmatpush1.msra.mxu0 0.0
    %963 = vmatprep.subr.mxu0 0.0
    %964 = vmatpush1.msra.mxu0 0.0
    %965 = vmatprep.subr.mxu0 0.0
    %966 = vmatpush1.msra.mxu0 0.0
    %967 = vmatprep.subr.mxu0 0.0
    %968 = vmatpush1.msra.mxu0 0.0
    %969 = vmatprep.subr.mxu0 0.0
    %970 = vmatpush1.msra.mxu0 0.0
    %971 = vmatprep.subr.mxu0 0.0
    %972 = vmatpush1.msra.mxu0 0.0
    %973 = vmatprep.subr.mxu0 0.0
    %974 = vmatpush1.msra.mxu0 0.0
    %975 = vmatprep.subr.mxu0 0.0
    %976 = vmatpush1.msra.mxu0 0.0
    %977 = vmatprep.subr.mxu0 0.0
    %978 = vmatpush1.msra.mxu0 0.0
    %979 = vmatprep.subr.mxu0 0.0
    %980 = vmatpush1.msra.mxu0 0.0
    %981 = vmatprep.subr.mxu0 0.0
    %982 = vmatpush1.msra.mxu0 0.0
    %983 = vmatprep.subr.mxu0 0.0
    %984 = vmatpush1.msra.mxu0 0.0
    %985 = vmatprep.subr.mxu0 0.0
    %986 = vmatpush1.msra.mxu0 0.0
    %987 = vmatprep.mubr.f32.mxu0 0.0
    %988 = vmatmul.mubr.f32.gmra.mrb[0].mxu0 %v850
    %v989 = vpop.f32.mrb[0].mxu0
    %v990 = vadd.f32 %v799, %v989
    %v991 = vpop.f32.mrb[0].mxu0
    %v992 = vadd.f32 %v803, %v991
    %993 = vdwg.mxu0
    %994 = vmatprep.subr.mxu0 %v777
    %995 = vmatpush1.msra.mxu0 %v776
    %996 = vmatprep.subr.mxu0 0.0
    %997 = vmatpush1.msra.mxu0 0.0
    %998 = vmatprep.subr.mxu0 0.0
    %999 = vmatpush1.msra.mxu0 0.0
    %1000 = vmatprep.subr.mxu0 0.0
    %1001 = vmatpush1.msra.mxu0 0.0
    %1002 = vmatprep.subr.mxu0 0.0
    %1003 = vmatpush1.msra.mxu0 0.0
    %1004 = vmatprep.subr.mxu0 0.0
    %1005 = vmatpush1.msra.mxu0 0.0
    %1006 = vmatprep.subr.mxu0 0.0
    %1007 = vmatpush1.msra.mxu0 0.0
    %1008 = vmatprep.subr.mxu0 0.0
    %1009 = vmatpush1.msra.mxu0 0.0
    %1010 = vmatprep.subr.mxu0 0.0
    %1011 = vmatpush1.msra.mxu0 0.0
    %1012 = vmatprep.subr.mxu0 0.0
    %1013 = vmatpush1.msra.mxu0 0.0
    %1014 = vmatprep.subr.mxu0 0.0
    %1015 = vmatpush1.msra.mxu0 0.0
    %1016 = vmatprep.subr.mxu0 0.0
    %1017 = vmatpush1.msra.mxu0 0.0
    %1018 = vmatprep.subr.mxu0 0.0
    %1019 = vmatpush1.msra.mxu0 0.0
    %1020 = vmatprep.subr.mxu0 0.0
    %1021 = vmatpush1.msra.mxu0 0.0
    %1022 = vmatprep.subr.mxu0 0.0
    %1023 = vmatpush1.msra.mxu0 0.0
    %1024 = vmatprep.subr.mxu0 0.0
    %1025 = vmatpush1.msra.mxu0 0.0
    %1026 = vmatprep.subr.mxu0 0.0
    %1027 = vmatpush1.msra.mxu0 0.0
    %1028 = vmatprep.subr.mxu0 0.0
    %1029 = vmatpush1.msra.mxu0 0.0
    %1030 = vmatprep.subr.mxu0 0.0
    %1031 = vmatpush1.msra.mxu0 0.0
    %1032 = vmatprep.subr.mxu0 0.0
    %1033 = vmatpush1.msra.mxu0 0.0
    %1034 = vmatprep.subr.mxu0 0.0
    %1035 = vmatpush1.msra.mxu0 0.0
    %1036 = vmatprep.subr.mxu0 0.0
    %1037 = vmatpush1.msra.mxu0 0.0
    %1038 = vmatprep.subr.mxu0 0.0
    %1039 = vmatpush1.msra.mxu0 0.0
    %1040 = vmatprep.subr.mxu0 0.0
    %1041 = vmatpush1.msra.mxu0 0.0
    %1042 = vmatprep.subr.mxu0 0.0
    %1043 = vmatpush1.msra.mxu0 0.0
    %1044 = vmatprep.subr.mxu0 0.0
    %1045 = vmatpush1.msra.mxu0 0.0
    %1046 = vmatprep.subr.mxu0 0.0
    %1047 = vmatpush1.msra.mxu0 0.0
    %1048 = vmatprep.subr.mxu0 0.0
    %1049 = vmatpush1.msra.mxu0 0.0
    %1050 = vmatprep.subr.mxu0 0.0
    %1051 = vmatpush1.msra.mxu0 0.0
    %1052 = vmatprep.subr.mxu0 0.0
    %1053 = vmatpush1.msra.mxu0 0.0
    %1054 = vmatprep.subr.mxu0 0.0
    %1055 = vmatpush1.msra.mxu0 0.0
    %1056 = vmatprep.subr.mxu0 0.0
    %1057 = vmatpush1.msra.mxu0 0.0
    %1058 = vmatprep.mubr.f32.mxu0 0.0
    %1059 = vmatmul.mubr.f32.gmra.mrb[0].mxu0 %v850
    %v1060 = vpop.f32.mrb[0].mxu0
    %v1061 = vadd.f32 %v807, %v1060
    %v1062 = vpop.f32.mrb[0].mxu0
    %v1063 = vadd.f32 %v811, %v1062
    %1064 = vdwg.mxu0
    %1065 = vmatprep.subr.mxu0 %v779
    %1066 = vmatpush1.msra.mxu0 %v778
    %1067 = vmatprep.subr.mxu0 0.0
    %1068 = vmatpush1.msra.mxu0 0.0
    %1069 = vmatprep.subr.mxu0 0.0
    %1070 = vmatpush1.msra.mxu0 0.0
    %1071 = vmatprep.subr.mxu0 0.0
    %1072 = vmatpush1.msra.mxu0 0.0
    %1073 = vmatprep.subr.mxu0 0.0
    %1074 = vmatpush1.msra.mxu0 0.0
    %1075 = vmatprep.subr.mxu0 0.0
    %1076 = vmatpush1.msra.mxu0 0.0
    %1077 = vmatprep.subr.mxu0 0.0
    %1078 = vmatpush1.msra.mxu0 0.0
    %1079 = vmatprep.subr.mxu0 0.0
    %1080 = vmatpush1.msra.mxu0 0.0
    %1081 = vmatprep.subr.mxu0 0.0
    %1082 = vmatpush1.msra.mxu0 0.0
    %1083 = vmatprep.subr.mxu0 0.0
    %1084 = vmatpush1.msra.mxu0 0.0
    %1085 = vmatprep.subr.mxu0 0.0
    %1086 = vmatpush1.msra.mxu0 0.0
    %1087 = vmatprep.subr.mxu0 0.0
    %1088 = vmatpush1.msra.mxu0 0.0
    %1089 = vmatprep.subr.mxu0 0.0
    %1090 = vmatpush1.msra.mxu0 0.0
    %1091 = vmatprep.subr.mxu0 0.0
    %1092 = vmatpush1.msra.mxu0 0.0
    %1093 = vmatprep.subr.mxu0 0.0
    %1094 = vmatpush1.msra.mxu0 0.0
    %1095 = vmatprep.subr.mxu0 0.0
    %1096 = vmatpush1.msra.mxu0 0.0
    %1097 = vmatprep.subr.mxu0 0.0
    %1098 = vmatpush1.msra.mxu0 0.0
    %1099 = vmatprep.subr.mxu0 0.0
    %1100 = vmatpush1.msra.mxu0 0.0
    %1101 = vmatprep.subr.mxu0 0.0
    %1102 = vmatpush1.msra.mxu0 0.0
    %1103 = vmatprep.subr.mxu0 0.0
    %1104 = vmatpush1.msra.mxu0 0.0
    %1105 = vmatprep.subr.mxu0 0.0
    %1106 = vmatpush1.msra.mxu0 0.0
    %1107 = vmatprep.subr.mxu0 0.0
    %1108 = vmatpush1.msra.mxu0 0.0
    %1109 = vmatprep.subr.mxu0 0.0
    %1110 = vmatpush1.msra.mxu0 0.0
    %1111 = vmatprep.subr.mxu0 0.0
    %1112 = vmatpush1.msra.mxu0 0.0
    %1113 = vmatprep.subr.mxu0 0.0
    %1114 = vmatpush1.msra.mxu0 0.0
    %1115 = vmatprep.subr.mxu0 0.0
    %1116 = vmatpush1.msra.mxu0 0.0
    %1117 = vmatprep.subr.mxu0 0.0
    %1118 = vmatpush1.msra.mxu0 0.0
    %1119 = vmatprep.subr.mxu0 0.0
    %1120 = vmatpush1.msra.mxu0 0.0
    %1121 = vmatprep.subr.mxu0 0.0
    %1122 = vmatpush1.msra.mxu0 0.0
    %1123 = vmatprep.subr.mxu0 0.0
    %1124 = vmatpush1.msra.mxu0 0.0
    %1125 = vmatprep.subr.mxu0 0.0
    %1126 = vmatpush1.msra.mxu0 0.0
    %1127 = vmatprep.subr.mxu0 0.0
    %1128 = vmatpush1.msra.mxu0 0.0
    %1129 = vmatprep.mubr.f32.mxu0 0.0
    %1130 = vmatmul.mubr.f32.gmra.mrb[0].mxu0 %v850
    %v1131 = vpop.f32.mrb[0].mxu0
    %v1132 = vadd.f32 %v815, %v1131
    %v1133 = vpop.f32.mrb[0].mxu0
    %v1134 = vadd.f32 %v819, %v1133
    %1135 = vdwg.mxu0
    %1136 = vmatprep.subr.mxu0 %v781
    %1137 = vmatpush1.msra.mxu0 %v780
    %1138 = vmatprep.subr.mxu0 0.0
    %1139 = vmatpush1.msra.mxu0 0.0
    %1140 = vmatprep.subr.mxu0 0.0
    %1141 = vmatpush1.msra.mxu0 0.0
    %1142 = vmatprep.subr.mxu0 0.0
    %1143 = vmatpush1.msra.mxu0 0.0
    %1144 = vmatprep.subr.mxu0 0.0
    %1145 = vmatpush1.msra.mxu0 0.0
    %1146 = vmatprep.subr.mxu0 0.0
    %1147 = vmatpush1.msra.mxu0 0.0
    %1148 = vmatprep.subr.mxu0 0.0
    %1149 = vmatpush1.msra.mxu0 0.0
    %1150 = vmatprep.subr.mxu0 0.0
    %1151 = vmatpush1.msra.mxu0 0.0
    %1152 = vmatprep.subr.mxu0 0.0
    %1153 = vmatpush1.msra.mxu0 0.0
    %1154 = vmatprep.subr.mxu0 0.0
    %1155 = vmatpush1.msra.mxu0 0.0
    %1156 = vmatprep.subr.mxu0 0.0
    %1157 = vmatpush1.msra.mxu0 0.0
    %1158 = vmatprep.subr.mxu0 0.0
    %1159 = vmatpush1.msra.mxu0 0.0
    %1160 = vmatprep.subr.mxu0 0.0
    %1161 = vmatpush1.msra.mxu0 0.0
    %1162 = vmatprep.subr.mxu0 0.0
    %1163 = vmatpush1.msra.mxu0 0.0
    %1164 = vmatprep.subr.mxu0 0.0
    %1165 = vmatpush1.msra.mxu0 0.0
    %1166 = vmatprep.subr.mxu0 0.0
    %1167 = vmatpush1.msra.mxu0 0.0
    %1168 = vmatprep.subr.mxu0 0.0
    %1169 = vmatpush1.msra.mxu0 0.0
    %1170 = vmatprep.subr.mxu0 0.0
    %1171 = vmatpush1.msra.mxu0 0.0
    %1172 = vmatprep.subr.mxu0 0.0
    %1173 = vmatpush1.msra.mxu0 0.0
    %1174 = vmatprep.subr.mxu0 0.0
    %1175 = vmatpush1.msra.mxu0 0.0
    %1176 = vmatprep.subr.mxu0 0.0
    %1177 = vmatpush1.msra.mxu0 0.0
    %1178 = vmatprep.subr.mxu0 0.0
    %1179 = vmatpush1.msra.mxu0 0.0
    %1180 = vmatprep.subr.mxu0 0.0
    %1181 = vmatpush1.msra.mxu0 0.0
    %1182 = vmatprep.subr.mxu0 0.0
    %1183 = vmatpush1.msra.mxu0 0.0
    %1184 = vmatprep.subr.mxu0 0.0
    %1185 = vmatpush1.msra.mxu0 0.0
    %1186 = vmatprep.subr.mxu0 0.0
    %1187 = vmatpush1.msra.mxu0 0.0
    %1188 = vmatprep.subr.mxu0 0.0
    %1189 = vmatpush1.msra.mxu0 0.0
    %1190 = vmatprep.subr.mxu0 0.0
    %1191 = vmatpush1.msra.mxu0 0.0
    %1192 = vmatprep.subr.mxu0 0.0
    %1193 = vmatpush1.msra.mxu0 0.0
    %1194 = vmatprep.subr.mxu0 0.0
    %1195 = vmatpush1.msra.mxu0 0.0
    %1196 = vmatprep.subr.mxu0 0.0
    %1197 = vmatpush1.msra.mxu0 0.0
    %1198 = vmatprep.subr.mxu0 0.0
    %1199 = vmatpush1.msra.mxu0 0.0
    %1200 = vmatprep.mubr.f32.mxu0 0.0
    %1201 = vmatmul.mubr.f32.gmra.mrb[0].mxu0 %v850
    %v1202 = vpop.f32.mrb[0].mxu0
    %v1203 = vadd.f32 %v823, %v1202
    %v1204 = vpop.f32.mrb[0].mxu0
    %v1205 = vadd.f32 %v827, %v1204
    %1206 = vdwg.mxu0
    %1207 = vmatprep.subr.mxu0 %v783
    %1208 = vmatpush1.msra.mxu0 %v782
    %1209 = vmatprep.subr.mxu0 0.0
    %1210 = vmatpush1.msra.mxu0 0.0
    %1211 = vmatprep.subr.mxu0 0.0
    %1212 = vmatpush1.msra.mxu0 0.0
    %1213 = vmatprep.subr.mxu0 0.0
    %1214 = vmatpush1.msra.mxu0 0.0
    %1215 = vmatprep.subr.mxu0 0.0
    %1216 = vmatpush1.msra.mxu0 0.0
    %1217 = vmatprep.subr.mxu0 0.0
    %1218 = vmatpush1.msra.mxu0 0.0
    %1219 = vmatprep.subr.mxu0 0.0
    %1220 = vmatpush1.msra.mxu0 0.0
    %1221 = vmatprep.subr.mxu0 0.0
    %1222 = vmatpush1.msra.mxu0 0.0
    %1223 = vmatprep.subr.mxu0 0.0
    %1224 = vmatpush1.msra.mxu0 0.0
    %1225 = vmatprep.subr.mxu0 0.0
    %1226 = vmatpush1.msra.mxu0 0.0
    %1227 = vmatprep.subr.mxu0 0.0
    %1228 = vmatpush1.msra.mxu0 0.0
    %1229 = vmatprep.subr.mxu0 0.0
    %1230 = vmatpush1.msra.mxu0 0.0
    %1231 = vmatprep.subr.mxu0 0.0
    %1232 = vmatpush1.msra.mxu0 0.0
    %1233 = vmatprep.subr.mxu0 0.0
    %1234 = vmatpush1.msra.mxu0 0.0
    %1235 = vmatprep.subr.mxu0 0.0
    %1236 = vmatpush1.msra.mxu0 0.0
    %1237 = vmatprep.subr.mxu0 0.0
    %1238 = vmatpush1.msra.mxu0 0.0
    %1239 = vmatprep.subr.mxu0 0.0
    %1240 = vmatpush1.msra.mxu0 0.0
    %1241 = vmatprep.subr.mxu0 0.0
    %1242 = vmatpush1.msra.mxu0 0.0
    %1243 = vmatprep.subr.mxu0 0.0
    %1244 = vmatpush1.msra.mxu0 0.0
    %1245 = vmatprep.subr.mxu0 0.0
    %1246 = vmatpush1.msra.mxu0 0.0
    %1247 = vmatprep.subr.mxu0 0.0
    %1248 = vmatpush1.msra.mxu0 0.0
    %1249 = vmatprep.subr.mxu0 0.0
    %1250 = vmatpush1.msra.mxu0 0.0
    %1251 = vmatprep.subr.mxu0 0.0
    %1252 = vmatpush1.msra.mxu0 0.0
    %1253 = vmatprep.subr.mxu0 0.0
    %1254 = vmatpush1.msra.mxu0 0.0
    %1255 = vmatprep.subr.mxu0 0.0
    %1256 = vmatpush1.msra.mxu0 0.0
    %1257 = vmatprep.subr.mxu0 0.0
    %1258 = vmatpush1.msra.mxu0 0.0
    %1259 = vmatprep.subr.mxu0 0.0
    %1260 = vmatpush1.msra.mxu0 0.0
    %1261 = vmatprep.subr.mxu0 0.0
    %1262 = vmatpush1.msra.mxu0 0.0
    %1263 = vmatprep.subr.mxu0 0.0
    %1264 = vmatpush1.msra.mxu0 0.0
    %1265 = vmatprep.subr.mxu0 0.0
    %1266 = vmatpush1.msra.mxu0 0.0
    %1267 = vmatprep.subr.mxu0 0.0
    %1268 = vmatpush1.msra.mxu0 0.0
    %1269 = vmatprep.subr.mxu0 0.0
    %1270 = vmatpush1.msra.mxu0 0.0
    %1271 = vmatprep.mubr.f32.mxu0 0.0
    %1272 = vmatmul.mubr.f32.gmra.mrb[0].mxu0 %v850
    %v1273 = vpop.f32.mrb[0].mxu0
    %v1274 = vadd.f32 %v831, %v1273
    %v1275 = vpop.f32.mrb[0].mxu0
    %v1276 = vadd.f32 %v835, %v1275
    %1277 = vdwg.mxu0
    %v1290 = vcombine.low %v919, %v921
    %v1291 = vcombine.low %v990, %v992
    %v1292 = vcombine.low %v1061, %v1063
    %v1293 = vcombine.low %v1132, %v1134
    %v1294 = vcombine.low %v1203, %v1205
    %v1295 = vcombine.low %v1274, %v1276
    %1302 = vst [vmem:[#allocation4] sm:$0xff] %v1290
    %1303 = vst [vmem:[#allocation4 + $0x8] sm:$0xff] %v1291
    %1304 = vst [vmem:[#allocation4 + $0x10] sm:$0xff] %v1292
    %1305 = vst [vmem:[#allocation4 + $0x18] sm:$0xff] %v1293
    %1306 = vst [vmem:[#allocation4 + $0x20] sm:$0xff] %v1294
    %1307 = vst [vmem:[#allocation4 + $0x28] sm:$0xff] %v1295
    // Predicated region
    $region34: #{_fused_forward.1} parent=1 // pred_check
      _
    $region35: #{_fused_forward.1} parent=1 // pred_check_branch
      %1309 = sbr.rel (0) target = $region37
    $region36: #{_fused_forward.1} parent=1 // pred_region
      %s1311 = ssub.s32 192, 192
      %1312 = vsyncadd [#allocation3], %s1311
      %s1313 = sshll.u32 [#allocation2], 4
      %s1314 = int_to_ptr.vmem [resolvable:$true] %s1313
      %1319 = dma.vmem_to_hbm [thread:$0]  %s1314, 192, %s8, [#allocation3], 64, 64, 4
    $region37: #{_fused_forward.1} parent=1 // pred_fallthru
      _
    // Predicated region
    $region38: #{_fused_forward.1} parent=1 // pred_check
      _
    $region39: #{_fused_forward.1} parent=1 // pred_check_branch
      %1321 = sbr.rel (0) target = $region41
    $region40: #{_fused_forward.1} parent=1 // pred_region
      %s1323 = ssub.s32 768, 768
      %1324 = vsyncadd [#allocation5], %s1323
      %s1326 = sshll.u32 [#allocation4], 4
      %s1327 = int_to_ptr.vmem [resolvable:$true] %s1326
      %1329 = dma.vmem_to_hbm [thread:$0]  %s1327, 768, %s9, [#allocation5]
    $region41: #{_fused_forward.1} parent=1 // pred_fallthru
      _
    // Predicated region
    $region42: #{_fused_forward.1} parent=1 // pred_check
      _
    $region43: #{_fused_forward.1} parent=1 // pred_check_branch
      %1331 = sbr.rel (0) target = $region45
    $region44: #{_fused_forward.1} parent=1 // pred_region
      %1332 = dma.done [#allocation3], 192
    $region45: #{_fused_forward.1} parent=1 // pred_fallthru
      _
    // Predicated region
    $region46: #{_fused_forward.1} parent=1 // pred_check
      _
    $region47: #{_fused_forward.1} parent=1 // pred_check_branch
      %1334 = sbr.rel (0) target = $region49
    $region48: #{_fused_forward.1} parent=1 // pred_region
      %1335 = dma.done [#allocation5], 768
    $region49: #{_fused_forward.1} parent=1 // pred_fallthru
      _
    %1336 = vsyncpa [#allocation3], 1
    %1337 = vsyncpa [#allocation5], 1

</llo_original>
